<compile_context>
chip_gen: v7x
topology: tpu7x:2x2x1
jax: 0.10.0
libtpu: 0.0.40
codegen_flags: <defaults>
</compile_context>

<pallas_src>
import jax
import jax.numpy as jnp
from jax.experimental import pallas as pl
from jax.experimental.pallas import tpu as pltpu

# Module hyper-parameters (PyTorch defaults)
D_X = 3
D_Y = 2
N_ATOMS = 8
N_LAYERS = 3
N_NEURONS = 32
N_OUT = D_Y * N_ATOMS            # 16
BN_EPS = 1e-5

# Lane packing: 4 batch rows share one 128-lane vreg.
PACK = 4
PACKED_H = PACK * N_NEURONS      # 128  (hidden width in packed layout)
PACKED_OUT = PACK * N_OUT        # 64   (real output lanes; zero-padded to 128)


# ----------------------------------------------------------------------------
# Kernel
# ----------------------------------------------------------------------------
def _fold_lane_groups(v):
    """Sum the PACK lane-groups of a (1, PACK*N_NEURONS) row and broadcast the
    per-feature totals back to every group (exactly the layout BN needs).
    Lane slices + adds + tile only; negligible cost (two rows per layer)."""
    tot = v[:, 0:N_NEURONS]
    for g in range(1, PACK):
        tot = tot + v[:, g * N_NEURONS:(g + 1) * N_NEURONS]
    return jnp.tile(tot, (1, PACK))


def atomnet_kernel(xp_ref, w_in_ref, b_in_ref, w_h_ref, gamma_ref, beta_ref,
                   w_out_ref, b_out_ref, out_ref, h_ref):
    p = pl.program_id(0)                  # phase: 0 = stream-in + input FC
    c = pl.program_id(1)                  #        1 = layers (once) + stream-out
    chunk = xp_ref.shape[0]               # static chunk size (packed rows)
    np_rows = h_ref.shape[0]              # static total packed rows
    inv_n = 1.0 / float(PACK * np_rows)   # 1 / true batch size

    row0 = c * chunk
    if chunk % 8 == 0:
        row0 = pl.multiple_of(row0, 8)

    # ---- phase 0: input Linear + ReLU for this chunk -> persistent h slab.
    # The (chunk, 4*d_X) xp block DMA is double-buffered by the grid pipeline,
    # so HBM loads overlap the previous chunk's matmul.
    @pl.when(p == 0)
    def _():
        hc = jnp.dot(xp_ref[...], w_in_ref[...],
                     preferred_element_type=jnp.float32) + b_in_ref[...]
        h_ref[pl.ds(row0, chunk), :] = jnp.maximum(hc, 0.0)

    # ---- first step of phase 1: residual BN stack over the WHOLE batch -----
    @pl.when(jnp.logical_and(p == 1, c == 0))
    def _():
        h = h_ref[...]
        for i in range(N_LAYERS):                                # static unroll
            # fc (hidden bias omitted: it cancels exactly under the BN
            # batch-mean subtraction; variance is shift-invariant).
            z = jnp.dot(h, w_h_ref[i], preferred_element_type=jnp.float32)

            # BatchNorm1d (training mode): exact-f32 batch sums of z and z^2,
            # folded across the 4 lane-groups.
            s1 = _fold_lane_groups(jnp.sum(z, axis=0, keepdims=True))       # Σ z
            s2 = _fold_lane_groups(jnp.sum(z * z, axis=0, keepdims=True))   # Σ z²
            mean = s1 * inv_n                                    # (1, 128)
            var = s2 * inv_n - mean * mean                       # biased, 1-pass
            # Fold the affine: per-element epilogue is just z*scale + shift.
            scale = gamma_ref[i:i + 1, :] * jax.lax.rsqrt(var + BN_EPS)
            shift = beta_ref[i:i + 1, :] - mean * scale

            h = jnp.maximum(z * scale + shift, 0.0) + h          # relu + residual
        h_ref[...] = h

    # ---- phase 1: output Linear, one chunk per step.  Columns 64..127 of
    # w_out / b_out are zero padding -> full 128-lane unmasked stores; the
    # writeback DMA of chunk c overlaps the matmul of chunk c+1.
    @pl.when(p == 1)
    def _():
        hc = h_ref[pl.ds(row0, chunk), :]
        out_ref[...] = jnp.dot(hc, w_out_ref[...],
                               preferred_element_type=jnp.float32) + b_out_ref[...]


# ----------------------------------------------------------------------------
# Parameter packing (done once, outside the kernel)
# ----------------------------------------------------------------------------
def _block_diag_pack(w):
    """(..., a, b) -> (..., PACK*a, PACK*b): PACK copies of w on the diagonal."""
    a, b = w.shape[-2], w.shape[-1]
    out = jnp.zeros(w.shape[:-2] + (PACK * a, PACK * b), w.dtype)
    for g in range(PACK):
        out = out.at[..., g * a:(g + 1) * a, g * b:(g + 1) * b].set(w)
    return out


def pack_params(p):
    """Pre-build the lane-packed / block-diagonal parameter layout."""
    pad = PACKED_H - PACKED_OUT                               # 64 zero columns
    return {
        "w_in": _block_diag_pack(p["w_in"]),                  # (4*d_X, 128)
        "b_in": jnp.tile(p["b_in"], (1, PACK)),               # (1, 128)
        "w_h": _block_diag_pack(p["w_h"]),                    # (L, 128, 128)
        # b_h intentionally dropped: cancels exactly under BN mean subtraction.
        "gamma": jnp.tile(p["gamma"], (1, PACK)),             # (L, 128)
        "beta": jnp.tile(p["beta"], (1, PACK)),               # (L, 128)
        # zero-pad to 128 lanes -> unmasked full-width output store
        "w_out": jnp.pad(_block_diag_pack(p["w_out"]), ((0, 0), (0, pad))),
        "b_out": jnp.pad(jnp.tile(p["b_out"], (1, PACK)), ((0, 0), (0, pad))),
    }


# ----------------------------------------------------------------------------
# Wrapper
# ----------------------------------------------------------------------------
def _resident_spec(arr):
    """Whole-array block with a constant index map: DMA'd once, kept in VMEM."""
    zeros = (0,) * arr.ndim
    return pl.BlockSpec(arr.shape, lambda p, c, _z=zeros: _z)


def _pick_chunk(np_rows):
    """Largest chunk (multiple of 8) dividing np_rows with >= 2 chunks so the
    edge DMAs actually pipeline; otherwise one whole-batch chunk."""
    for cand in (512, 256, 128, 64, 32, 16, 8):
        if np_rows % cand == 0 and np_rows // cand >= 2:
            return cand
    return np_rows


def _vmem_limit_bytes(np_rows, chunk):
    """Scoped-VMEM budget: ~3 live h-sized slabs + double-buffered edge blocks
    + weights.  Raises the 16/32 MiB scoped default on v5e/v6e for large
    batches; for small ones it stays at the 32 MiB floor.  (v7x's 64 MiB
    physical VMEM caps the resident batch; beyond that a batch-tiled two-pass
    variant would be needed.)"""
    h_slab = np_rows * PACKED_H * 4
    bufs = 2 * chunk * (PACK * D_X + PACKED_H) * 4
    est = 3 * h_slab + bufs + (3 << 20)
    return int(min(max(est, 32 << 20), 100 << 20))


def atomnet_forward(x, packed_params):
    n = x.shape[0]
    assert n % PACK == 0, "batch size must be divisible by the pack factor (4)"
    np_rows = n // PACK
    chunk = _pick_chunk(np_rows)
    n_chunks = np_rows // chunk

    # Pack 4 consecutive batch rows per packed row (pure row-major reshape).
    # NOTE(perf): producing x already in this (N/4, 12) layout upstream (and
    # consuming the (N, 16) output directly) would remove two HBM relayout
    # copies that can rival the kernel wall time at these sizes.
    xp = x.reshape(np_rows, PACK * D_X)                       # (N/4, 12)

    # Two-phase grid: phase 0 streams xp chunks in (input FC -> h scratch),
    # phase 1 runs the BN/residual stack once then streams output chunks out.
    xp_spec = pl.BlockSpec((chunk, PACK * D_X), lambda p, c: ((1 - p) * c, 0))
    out_spec = pl.BlockSpec((chunk, PACKED_H), lambda p, c: (p * c, 0))

    out = pl.pallas_call(
        atomnet_kernel,
        out_shape=jax.ShapeDtypeStruct((np_rows, PACKED_H), jnp.float32),
        grid=(2, n_chunks),
        in_specs=[xp_spec,
                  _resident_spec(packed_params["w_in"]),
                  _resident_spec(packed_params["b_in"]),
                  _resident_spec(packed_params["w_h"]),
                  _resident_spec(packed_params["gamma"]),
                  _resident_spec(packed_params["beta"]),
                  _resident_spec(packed_params["w_out"]),
                  _resident_spec(packed_params["b_out"])],
        out_specs=out_spec,
        scratch_shapes=[pltpu.VMEM((np_rows, PACKED_H), jnp.float32)],
        compiler_params=pltpu.CompilerParams(
            dimension_semantics=("arbitrary", "arbitrary"),
            vmem_limit_bytes=_vmem_limit_bytes(np_rows, chunk)),
    )(xp, packed_params["w_in"], packed_params["b_in"], packed_params["w_h"],
      packed_params["gamma"], packed_params["beta"],
      packed_params["w_out"], packed_params["b_out"])

    # Strip lane padding (cols 64..127 are zeros) and unpack the 4-row groups.
    out = out[:, :PACKED_OUT].reshape(n, N_OUT)
    return out.reshape(-1, N_ATOMS, D_Y)


# ----------------------------------------------------------------------------
# Parameter init (original / unpacked layout, weights stored as (n_in, n_out))
# ----------------------------------------------------------------------------
def init_params(key):
    ks = jax.random.split(key, 6)
    return {
        "w_in": 0.1 * jax.random.normal(ks[0], (D_X, N_NEURONS), jnp.float32),
        "b_in": 0.1 * jax.random.normal(ks[1], (1, N_NEURONS), jnp.float32),
        "w_h": 0.1 * jax.random.normal(ks[2], (N_LAYERS, N_NEURONS, N_NEURONS),
                                       jnp.float32),
        "b_h": 0.1 * jax.random.normal(ks[3], (N_LAYERS, N_NEURONS), jnp.float32),
        "gamma": jnp.ones((N_LAYERS, N_NEURONS), jnp.float32),   # PyTorch default
        "beta": jnp.zeros((N_LAYERS, N_NEURONS), jnp.float32),   # PyTorch default
        "w_out": 0.1 * jax.random.normal(ks[4], (N_NEURONS, N_OUT), jnp.float32),
        "b_out": 0.1 * jax.random.normal(ks[5], (1, N_OUT), jnp.float32),
    }


def atomnet_reference(x, p):
    """Pure-JAX reference (unpacked layout, WITH hidden bias) for checking."""
    h = jnp.maximum(x @ p["w_in"] + p["b_in"], 0.0)
    for i in range(N_LAYERS):
        z = h @ p["w_h"][i] + p["b_h"][i]
        mean = jnp.mean(z, axis=0, keepdims=True)
        var = jnp.mean((z - mean) ** 2, axis=0, keepdims=True)
        zn = (z - mean) / jnp.sqrt(var + BN_EPS) * p["gamma"][i] + p["beta"][i]
        h = jnp.maximum(zn, 0.0) + h
    out = h @ p["w_out"] + p["b_out"]
    return out.reshape(-1, N_ATOMS, D_Y)


if __name__ == "__main__":
    key = jax.random.PRNGKey(0)
    k_x, k_p = jax.random.split(key)

    batch = 64                      # multiple of PACK (=4); exercises 2 chunks
    x = jax.random.normal(k_x, (batch, D_X), jnp.float32)
    params = init_params(k_p)
    packed = pack_params(params)    # built once

    y = atomnet_forward(x, packed)
    y = jax.block_until_ready(y)

    y_ref = atomnet_reference(x, params)
    assert y.shape == (batch, N_ATOMS, D_Y), y.shape
    assert jnp.allclose(y, y_ref, atol=2e-4, rtol=2e-4), "mismatch vs reference"

    print("KERNEL_OK")
</pallas_src>

<mosaic_0001>
module attributes {stable_mosaic.version = 11 : i64} {
  func.func @atomnet_kernel(%arg0: i32, %arg1: i32, %arg2: memref<8x12xf32, #tpu.memory_space<vmem>>, %arg3: memref<12x128xf32, #tpu.memory_space<vmem>>, %arg4: memref<1x128xf32, #tpu.memory_space<vmem>>, %arg5: memref<3x128x128xf32, #tpu.memory_space<vmem>>, %arg6: memref<3x128xf32, #tpu.memory_space<vmem>>, %arg7: memref<3x128xf32, #tpu.memory_space<vmem>>, %arg8: memref<128x128xf32, #tpu.memory_space<vmem>>, %arg9: memref<1x128xf32, #tpu.memory_space<vmem>>, %arg10: memref<8x128xf32, #tpu.memory_space<vmem>>, %arg11: memref<16x128xf32, #tpu.memory_space<vmem>>) attributes {dimension_semantics = [#tpu.dimension_semantics<arbitrary>, #tpu.dimension_semantics<arbitrary>], iteration_bounds = array<i64: 2, 2>, scalar_prefetch = 0 : i64, scratch_operands = 1 : i64, tpu.core_type = #tpu.core_type<tc>, window_params = [{transform_indices = @transform_0, window_bounds = array<i64: 8, 12>}, {pipeline_mode = #tpu.pipeline_mode<synchronous>, transform_indices = @transform_1, window_bounds = array<i64: 12, 128>}, {pipeline_mode = #tpu.pipeline_mode<synchronous>, transform_indices = @transform_2, window_bounds = array<i64: 1, 128>}, {pipeline_mode = #tpu.pipeline_mode<synchronous>, transform_indices = @transform_3, window_bounds = array<i64: 3, 128, 128>}, {pipeline_mode = #tpu.pipeline_mode<synchronous>, transform_indices = @transform_4, window_bounds = array<i64: 3, 128>}, {pipeline_mode = #tpu.pipeline_mode<synchronous>, transform_indices = @transform_5, window_bounds = array<i64: 3, 128>}, {pipeline_mode = #tpu.pipeline_mode<synchronous>, transform_indices = @transform_6, window_bounds = array<i64: 128, 128>}, {pipeline_mode = #tpu.pipeline_mode<synchronous>, transform_indices = @transform_7, window_bounds = array<i64: 1, 128>}, {transform_indices = @transform_8, window_bounds = array<i64: 8, 128>}]} {
    %c8_i32 = arith.constant 8 : i32
    %0 = arith.muli %arg1, %c8_i32 : i32
    %1 = tpu.assume_multiple %0, 8 : i32
    %c0_i32 = arith.constant 0 : i32
    %2 = arith.cmpi eq, %arg0, %c0_i32 : i32
    %3 = arith.extui %2 : i1 to i32
    %c0_i32_0 = arith.constant 0 : i32
    %4 = arith.cmpi ne, %3, %c0_i32_0 : i32
    scf.if %4 {
      %c0 = arith.constant 0 : index
      %c0_5 = arith.constant 0 : index
      %13 = vector.load %arg2[%c0, %c0_5] : memref<8x12xf32, #tpu.memory_space<vmem>>, vector<8x12xf32>
      %c0_6 = arith.constant 0 : index
      %c0_7 = arith.constant 0 : index
      %14 = vector.load %arg3[%c0_6, %c0_7] : memref<12x128xf32, #tpu.memory_space<vmem>>, vector<12x128xf32>
      %cst = arith.constant dense<0.000000e+00> : vector<8x128xf32>
      %15 = tpu.matmul %13, %14, %cst {dimension_numbers = #tpu.dot_dimension_numbers<[1], [0], [0], [1], [0, 0, 1, 1], [], []>} : vector<8x12xf32>, vector<12x128xf32>, vector<8x128xf32> -> vector<8x128xf32>
      %c0_8 = arith.constant 0 : index
      %c0_9 = arith.constant 0 : index
      %16 = vector.load %arg4[%c0_8, %c0_9] : memref<1x128xf32, #tpu.memory_space<vmem>>, vector<1x128xf32>
      %17 = vector.broadcast %16 : vector<1x128xf32> to vector<8x128xf32>
      %18 = arith.addf %15, %17 : vector<8x128xf32>
      %cst_10 = arith.constant 0.000000e+00 : f32
      %19 = vector.broadcast %cst_10 : f32 to vector<8x128xf32>
      %20 = arith.maximumf %18, %19 : vector<8x128xf32>
      %21 = arith.index_cast %1 : i32 to index
      %c0_11 = arith.constant 0 : index
      %22 = vector.load %arg11[%21, %c0_11] : memref<16x128xf32, #tpu.memory_space<vmem>>, vector<8x128xf32>
      tpu.vector_store %arg11[%21, %c0_11], %20 {strides = array<i32>} : memref<16x128xf32, #tpu.memory_space<vmem>>, vector<8x128xf32>,
    } else {
    }
    %c1_i32 = arith.constant 1 : i32
    %5 = arith.cmpi eq, %arg0, %c1_i32 : i32
    %c0_i32_1 = arith.constant 0 : i32
    %6 = arith.cmpi eq, %arg1, %c0_i32_1 : i32
    %7 = arith.andi %5, %6 : i1
    %8 = arith.extui %7 : i1 to i32
    %c0_i32_2 = arith.constant 0 : i32
    %9 = arith.cmpi ne, %8, %c0_i32_2 : i32
    scf.if %9 {
      %c0 = arith.constant 0 : index
      %c0_5 = arith.constant 0 : index
      %13 = vector.load %arg11[%c0, %c0_5] : memref<16x128xf32, #tpu.memory_space<vmem>>, vector<16x128xf32>
      %c0_6 = arith.constant 0 : index
      %c0_7 = arith.constant 0 : index
      %c0_8 = arith.constant 0 : index
      %14 = vector.load %arg5[%c0_6, %c0_7, %c0_8] : memref<3x128x128xf32, #tpu.memory_space<vmem>>, vector<1x128x128xf32>
      %15 = vector.shape_cast %14 : vector<1x128x128xf32> to vector<128x128xf32>
      %cst = arith.constant dense<0.000000e+00> : vector<16x128xf32>
      %16 = tpu.matmul %13, %15, %cst {dimension_numbers = #tpu.dot_dimension_numbers<[1], [0], [0], [1], [0, 0, 1, 1], [], []>} : vector<16x128xf32>, vector<128x128xf32>, vector<16x128xf32> -> vector<16x128xf32>
      %cst_9 = arith.constant dense<0.000000e+00> : vector<128xf32>
      %17 = vector.multi_reduction <add>, %16, %cst_9 [0] : vector<16x128xf32> to vector<128xf32>
      %18 = vector.shape_cast %17 : vector<128xf32> to vector<1x128xf32>
      %19 = vector.extract_strided_slice %18 {offsets = [0, 0], sizes = [1, 32], strides = [1, 1]} : vector<1x128xf32> to vector<1x32xf32>
      %20 = vector.extract_strided_slice %18 {offsets = [0, 32], sizes = [1, 32], strides = [1, 1]} : vector<1x128xf32> to vector<1x32xf32>
      %21 = arith.addf %19, %20 : vector<1x32xf32>
      %22 = vector.extract_strided_slice %18 {offsets = [0, 64], sizes = [1, 32], strides = [1, 1]} : vector<1x128xf32> to vector<1x32xf32>
      %23 = arith.addf %21, %22 : vector<1x32xf32>
      %24 = vector.extract_strided_slice %18 {offsets = [0, 96], sizes = [1, 32], strides = [1, 1]} : vector<1x128xf32> to vector<1x32xf32>
      %25 = arith.addf %23, %24 : vector<1x32xf32>
      %26 = tpu.concatenate %25, %25, %25, %25 in 1 : vector<1x32xf32>, vector<1x32xf32>, vector<1x32xf32>, vector<1x32xf32> -> vector<1x128xf32>
      %27 = arith.mulf %16, %16 : vector<16x128xf32>
      %cst_10 = arith.constant dense<0.000000e+00> : vector<128xf32>
      %28 = vector.multi_reduction <add>, %27, %cst_10 [0] : vector<16x128xf32> to vector<128xf32>
      %29 = vector.shape_cast %28 : vector<128xf32> to vector<1x128xf32>
      %30 = vector.extract_strided_slice %29 {offsets = [0, 0], sizes = [1, 32], strides = [1, 1]} : vector<1x128xf32> to vector<1x32xf32>
      %31 = vector.extract_strided_slice %29 {offsets = [0, 32], sizes = [1, 32], strides = [1, 1]} : vector<1x128xf32> to vector<1x32xf32>
      %32 = arith.addf %30, %31 : vector<1x32xf32>
      %33 = vector.extract_strided_slice %29 {offsets = [0, 64], sizes = [1, 32], strides = [1, 1]} : vector<1x128xf32> to vector<1x32xf32>
      %34 = arith.addf %32, %33 : vector<1x32xf32>
      %35 = vector.extract_strided_slice %29 {offsets = [0, 96], sizes = [1, 32], strides = [1, 1]} : vector<1x128xf32> to vector<1x32xf32>
      %36 = arith.addf %34, %35 : vector<1x32xf32>
      %37 = tpu.concatenate %36, %36, %36, %36 in 1 : vector<1x32xf32>, vector<1x32xf32>, vector<1x32xf32>, vector<1x32xf32> -> vector<1x128xf32>
      %cst_11 = arith.constant 1.562500e-02 : f32
      %38 = vector.broadcast %cst_11 : f32 to vector<1x128xf32>
      %39 = arith.mulf %26, %38 : vector<1x128xf32>
      %cst_12 = arith.constant 1.562500e-02 : f32
      %40 = vector.broadcast %cst_12 : f32 to vector<1x128xf32>
      %41 = arith.mulf %37, %40 : vector<1x128xf32>
      %42 = arith.mulf %39, %39 : vector<1x128xf32>
      %43 = arith.subf %41, %42 : vector<1x128xf32>
      %c0_13 = arith.constant 0 : index
      %c0_14 = arith.constant 0 : index
      %44 = vector.load %arg6[%c0_13, %c0_14] : memref<3x128xf32, #tpu.memory_space<vmem>>, vector<1x128xf32>
      %cst_15 = arith.constant 9.99999974E-6 : f32
      %45 = vector.broadcast %cst_15 : f32 to vector<1x128xf32>
      %46 = arith.addf %43, %45 : vector<1x128xf32>
      %47 = math.rsqrt %46 : vector<1x128xf32>
      %48 = arith.mulf %44, %47 : vector<1x128xf32>
      %c0_16 = arith.constant 0 : index
      %c0_17 = arith.constant 0 : index
      %49 = vector.load %arg7[%c0_16, %c0_17] : memref<3x128xf32, #tpu.memory_space<vmem>>, vector<1x128xf32>
      %50 = arith.mulf %39, %48 : vector<1x128xf32>
      %51 = arith.subf %49, %50 : vector<1x128xf32>
      %52 = vector.broadcast %48 : vector<1x128xf32> to vector<16x128xf32>
      %53 = arith.mulf %16, %52 : vector<16x128xf32>
      %54 = vector.broadcast %51 : vector<1x128xf32> to vector<16x128xf32>
      %55 = arith.addf %53, %54 : vector<16x128xf32>
      %cst_18 = arith.constant 0.000000e+00 : f32
      %56 = vector.broadcast %cst_18 : f32 to vector<16x128xf32>
      %57 = arith.maximumf %55, %56 : vector<16x128xf32>
      %58 = arith.addf %57, %13 : vector<16x128xf32>
      %c1 = arith.constant 1 : index
      %c0_19 = arith.constant 0 : index
      %c0_20 = arith.constant 0 : index
      %59 = vector.load %arg5[%c1, %c0_19, %c0_20] : memref<3x128x128xf32, #tpu.memory_space<vmem>>, vector<1x128x128xf32>
      %60 = vector.shape_cast %59 : vector<1x128x128xf32> to vector<128x128xf32>
      %cst_21 = arith.constant dense<0.000000e+00> : vector<16x128xf32>
      %61 = tpu.matmul %58, %60, %cst_21 {dimension_numbers = #tpu.dot_dimension_numbers<[1], [0], [0], [1], [0, 0, 1, 1], [], []>} : vector<16x128xf32>, vector<128x128xf32>, vector<16x128xf32> -> vector<16x128xf32>
      %cst_22 = arith.constant dense<0.000000e+00> : vector<128xf32>
      %62 = vector.multi_reduction <add>, %61, %cst_22 [0] : vector<16x128xf32> to vector<128xf32>
      %63 = vector.shape_cast %62 : vector<128xf32> to vector<1x128xf32>
      %64 = vector.extract_strided_slice %63 {offsets = [0, 0], sizes = [1, 32], strides = [1, 1]} : vector<1x128xf32> to vector<1x32xf32>
      %65 = vector.extract_strided_slice %63 {offsets = [0, 32], sizes = [1, 32], strides = [1, 1]} : vector<1x128xf32> to vector<1x32xf32>
      %66 = arith.addf %64, %65 : vector<1x32xf32>
      %67 = vector.extract_strided_slice %63 {offsets = [0, 64], sizes = [1, 32], strides = [1, 1]} : vector<1x128xf32> to vector<1x32xf32>
      %68 = arith.addf %66, %67 : vector<1x32xf32>
      %69 = vector.extract_strided_slice %63 {offsets = [0, 96], sizes = [1, 32], strides = [1, 1]} : vector<1x128xf32> to vector<1x32xf32>
      %70 = arith.addf %68, %69 : vector<1x32xf32>
      %71 = tpu.concatenate %70, %70, %70, %70 in 1 : vector<1x32xf32>, vector<1x32xf32>, vector<1x32xf32>, vector<1x32xf32> -> vector<1x128xf32>
      %72 = arith.mulf %61, %61 : vector<16x128xf32>
      %cst_23 = arith.constant dense<0.000000e+00> : vector<128xf32>
      %73 = vector.multi_reduction <add>, %72, %cst_23 [0] : vector<16x128xf32> to vector<128xf32>
      %74 = vector.shape_cast %73 : vector<128xf32> to vector<1x128xf32>
      %75 = vector.extract_strided_slice %74 {offsets = [0, 0], sizes = [1, 32], strides = [1, 1]} : vector<1x128xf32> to vector<1x32xf32>
      %76 = vector.extract_strided_slice %74 {offsets = [0, 32], sizes = [1, 32], strides = [1, 1]} : vector<1x128xf32> to vector<1x32xf32>
      %77 = arith.addf %75, %76 : vector<1x32xf32>
      %78 = vector.extract_strided_slice %74 {offsets = [0, 64], sizes = [1, 32], strides = [1, 1]} : vector<1x128xf32> to vector<1x32xf32>
      %79 = arith.addf %77, %78 : vector<1x32xf32>
      %80 = vector.extract_strided_slice %74 {offsets = [0, 96], sizes = [1, 32], strides = [1, 1]} : vector<1x128xf32> to vector<1x32xf32>
      %81 = arith.addf %79, %80 : vector<1x32xf32>
      %82 = tpu.concatenate %81, %81, %81, %81 in 1 : vector<1x32xf32>, vector<1x32xf32>, vector<1x32xf32>, vector<1x32xf32> -> vector<1x128xf32>
      %cst_24 = arith.constant 1.562500e-02 : f32
      %83 = vector.broadcast %cst_24 : f32 to vector<1x128xf32>
      %84 = arith.mulf %71, %83 : vector<1x128xf32>
      %cst_25 = arith.constant 1.562500e-02 : f32
      %85 = vector.broadcast %cst_25 : f32 to vector<1x128xf32>
      %86 = arith.mulf %82, %85 : vector<1x128xf32>
      %87 = arith.mulf %84, %84 : vector<1x128xf32>
      %88 = arith.subf %86, %87 : vector<1x128xf32>
      %c1_26 = arith.constant 1 : index
      %c0_27 = arith.constant 0 : index
      %89 = vector.load %arg6[%c1_26, %c0_27] : memref<3x128xf32, #tpu.memory_space<vmem>>, vector<1x128xf32>
      %cst_28 = arith.constant 9.99999974E-6 : f32
      %90 = vector.broadcast %cst_28 : f32 to vector<1x128xf32>
      %91 = arith.addf %88, %90 : vector<1x128xf32>
      %92 = math.rsqrt %91 : vector<1x128xf32>
      %93 = arith.mulf %89, %92 : vector<1x128xf32>
      %c1_29 = arith.constant 1 : index
      %c0_30 = arith.constant 0 : index
      %94 = vector.load %arg7[%c1_29, %c0_30] : memref<3x128xf32, #tpu.memory_space<vmem>>, vector<1x128xf32>
      %95 = arith.mulf %84, %93 : vector<1x128xf32>
      %96 = arith.subf %94, %95 : vector<1x128xf32>
      %97 = vector.broadcast %93 : vector<1x128xf32> to vector<16x128xf32>
      %98 = arith.mulf %61, %97 : vector<16x128xf32>
      %99 = vector.broadcast %96 : vector<1x128xf32> to vector<16x128xf32>
      %100 = arith.addf %98, %99 : vector<16x128xf32>
      %cst_31 = arith.constant 0.000000e+00 : f32
      %101 = vector.broadcast %cst_31 : f32 to vector<16x128xf32>
      %102 = arith.maximumf %100, %101 : vector<16x128xf32>
      %103 = arith.addf %102, %58 : vector<16x128xf32>
      %c2 = arith.constant 2 : index
      %c0_32 = arith.constant 0 : index
      %c0_33 = arith.constant 0 : index
      %104 = vector.load %arg5[%c2, %c0_32, %c0_33] : memref<3x128x128xf32, #tpu.memory_space<vmem>>, vector<1x128x128xf32>
      %105 = vector.shape_cast %104 : vector<1x128x128xf32> to vector<128x128xf32>
      %cst_34 = arith.constant dense<0.000000e+00> : vector<16x128xf32>
      %106 = tpu.matmul %103, %105, %cst_34 {dimension_numbers = #tpu.dot_dimension_numbers<[1], [0], [0], [1], [0, 0, 1, 1], [], []>} : vector<16x128xf32>, vector<128x128xf32>, vector<16x128xf32> -> vector<16x128xf32>
      %cst_35 = arith.constant dense<0.000000e+00> : vector<128xf32>
      %107 = vector.multi_reduction <add>, %106, %cst_35 [0] : vector<16x128xf32> to vector<128xf32>
      %108 = vector.shape_cast %107 : vector<128xf32> to vector<1x128xf32>
      %109 = vector.extract_strided_slice %108 {offsets = [0, 0], sizes = [1, 32], strides = [1, 1]} : vector<1x128xf32> to vector<1x32xf32>
      %110 = vector.extract_strided_slice %108 {offsets = [0, 32], sizes = [1, 32], strides = [1, 1]} : vector<1x128xf32> to vector<1x32xf32>
      %111 = arith.addf %109, %110 : vector<1x32xf32>
      %112 = vector.extract_strided_slice %108 {offsets = [0, 64], sizes = [1, 32], strides = [1, 1]} : vector<1x128xf32> to vector<1x32xf32>
      %113 = arith.addf %111, %112 : vector<1x32xf32>
      %114 = vector.extract_strided_slice %108 {offsets = [0, 96], sizes = [1, 32], strides = [1, 1]} : vector<1x128xf32> to vector<1x32xf32>
      %115 = arith.addf %113, %114 : vector<1x32xf32>
      %116 = tpu.concatenate %115, %115, %115, %115 in 1 : vector<1x32xf32>, vector<1x32xf32>, vector<1x32xf32>, vector<1x32xf32> -> vector<1x128xf32>
      %117 = arith.mulf %106, %106 : vector<16x128xf32>
      %cst_36 = arith.constant dense<0.000000e+00> : vector<128xf32>
      %118 = vector.multi_reduction <add>, %117, %cst_36 [0] : vector<16x128xf32> to vector<128xf32>
      %119 = vector.shape_cast %118 : vector<128xf32> to vector<1x128xf32>
      %120 = vector.extract_strided_slice %119 {offsets = [0, 0], sizes = [1, 32], strides = [1, 1]} : vector<1x128xf32> to vector<1x32xf32>
      %121 = vector.extract_strided_slice %119 {offsets = [0, 32], sizes = [1, 32], strides = [1, 1]} : vector<1x128xf32> to vector<1x32xf32>
      %122 = arith.addf %120, %121 : vector<1x32xf32>
      %123 = vector.extract_strided_slice %119 {offsets = [0, 64], sizes = [1, 32], strides = [1, 1]} : vector<1x128xf32> to vector<1x32xf32>
      %124 = arith.addf %122, %123 : vector<1x32xf32>
      %125 = vector.extract_strided_slice %119 {offsets = [0, 96], sizes = [1, 32], strides = [1, 1]} : vector<1x128xf32> to vector<1x32xf32>
      %126 = arith.addf %124, %125 : vector<1x32xf32>
      %127 = tpu.concatenate %126, %126, %126, %126 in 1 : vector<1x32xf32>, vector<1x32xf32>, vector<1x32xf32>, vector<1x32xf32> -> vector<1x128xf32>
      %cst_37 = arith.constant 1.562500e-02 : f32
      %128 = vector.broadcast %cst_37 : f32 to vector<1x128xf32>
      %129 = arith.mulf %116, %128 : vector<1x128xf32>
      %cst_38 = arith.constant 1.562500e-02 : f32
      %130 = vector.broadcast %cst_38 : f32 to vector<1x128xf32>
      %131 = arith.mulf %127, %130 : vector<1x128xf32>
      %132 = arith.mulf %129, %129 : vector<1x128xf32>
      %133 = arith.subf %131, %132 : vector<1x128xf32>
      %c2_39 = arith.constant 2 : index
      %c0_40 = arith.constant 0 : index
      %134 = vector.load %arg6[%c2_39, %c0_40] : memref<3x128xf32, #tpu.memory_space<vmem>>, vector<1x128xf32>
      %cst_41 = arith.constant 9.99999974E-6 : f32
      %135 = vector.broadcast %cst_41 : f32 to vector<1x128xf32>
      %136 = arith.addf %133, %135 : vector<1x128xf32>
      %137 = math.rsqrt %136 : vector<1x128xf32>
      %138 = arith.mulf %134, %137 : vector<1x128xf32>
      %c2_42 = arith.constant 2 : index
      %c0_43 = arith.constant 0 : index
      %139 = vector.load %arg7[%c2_42, %c0_43] : memref<3x128xf32, #tpu.memory_space<vmem>>, vector<1x128xf32>
      %140 = arith.mulf %129, %138 : vector<1x128xf32>
      %141 = arith.subf %139, %140 : vector<1x128xf32>
      %142 = vector.broadcast %138 : vector<1x128xf32> to vector<16x128xf32>
      %143 = arith.mulf %106, %142 : vector<16x128xf32>
      %144 = vector.broadcast %141 : vector<1x128xf32> to vector<16x128xf32>
      %145 = arith.addf %143, %144 : vector<16x128xf32>
      %cst_44 = arith.constant 0.000000e+00 : f32
      %146 = vector.broadcast %cst_44 : f32 to vector<16x128xf32>
      %147 = arith.maximumf %145, %146 : vector<16x128xf32>
      %148 = arith.addf %147, %103 : vector<16x128xf32>
      %c0_45 = arith.constant 0 : index
      %c0_46 = arith.constant 0 : index
      %149 = vector.load %arg11[%c0_45, %c0_46] : memref<16x128xf32, #tpu.memory_space<vmem>>, vector<16x128xf32>
      tpu.vector_store %arg11[%c0_45, %c0_46], %148 {strides = array<i32>} : memref<16x128xf32, #tpu.memory_space<vmem>>, vector<16x128xf32>,
    } else {
    }
    %c1_i32_3 = arith.constant 1 : i32
    %10 = arith.cmpi eq, %arg0, %c1_i32_3 : i32
    %11 = arith.extui %10 : i1 to i32
    %c0_i32_4 = arith.constant 0 : i32
    %12 = arith.cmpi ne, %11, %c0_i32_4 : i32
    scf.if %12 {
      %13 = arith.index_cast %1 : i32 to index
      %c0 = arith.constant 0 : index
      %14 = vector.load %arg11[%13, %c0] : memref<16x128xf32, #tpu.memory_space<vmem>>, vector<8x128xf32>
      %c0_5 = arith.constant 0 : index
      %c0_6 = arith.constant 0 : index
      %15 = vector.load %arg8[%c0_5, %c0_6] : memref<128x128xf32, #tpu.memory_space<vmem>>, vector<128x128xf32>
      %cst = arith.constant dense<0.000000e+00> : vector<8x128xf32>
      %16 = tpu.matmul %14, %15, %cst {dimension_numbers = #tpu.dot_dimension_numbers<[1], [0], [0], [1], [0, 0, 1, 1], [], []>} : vector<8x128xf32>, vector<128x128xf32>, vector<8x128xf32> -> vector<8x128xf32>
      %c0_7 = arith.constant 0 : index
      %c0_8 = arith.constant 0 : index
      %17 = vector.load %arg9[%c0_7, %c0_8] : memref<1x128xf32, #tpu.memory_space<vmem>>, vector<1x128xf32>
      %18 = vector.broadcast %17 : vector<1x128xf32> to vector<8x128xf32>
      %19 = arith.addf %16, %18 : vector<8x128xf32>
      %c0_9 = arith.constant 0 : index
      %c0_10 = arith.constant 0 : index
      %20 = vector.load %arg10[%c0_9, %c0_10] : memref<8x128xf32, #tpu.memory_space<vmem>>, vector<8x128xf32>
      tpu.vector_store %arg10[%c0_9, %c0_10], %19 {strides = array<i32>} : memref<8x128xf32, #tpu.memory_space<vmem>>, vector<8x128xf32>,
    } else {
    }
    return
  }
  func.func @transform_0(%arg0: i32, %arg1: i32) -> (i32, i32) {
    %c1_i32 = arith.constant 1 : i32
    %0 = arith.subi %c1_i32, %arg0 : i32
    %1 = arith.muli %0, %arg1 : i32
    %c0_i32 = arith.constant 0 : i32
    %c0_i32_0 = arith.constant 0 : i32
    return %1, %c0_i32 : i32, i32
  }
  func.func @transform_1(%arg0: i32, %arg1: i32) -> (i32, i32) {
    %c0_i32 = arith.constant 0 : i32
    %c0_i32_0 = arith.constant 0 : i32
    %c0_i32_1 = arith.constant 0 : i32
    return %c0_i32, %c0_i32_0 : i32, i32
  }
  func.func @transform_2(%arg0: i32, %arg1: i32) -> (i32, i32) {
    %c0_i32 = arith.constant 0 : i32
    %c0_i32_0 = arith.constant 0 : i32
    %c0_i32_1 = arith.constant 0 : i32
    return %c0_i32, %c0_i32_0 : i32, i32
  }
  func.func @transform_3(%arg0: i32, %arg1: i32) -> (i32, i32, i32) {
    %c0_i32 = arith.constant 0 : i32
    %c0_i32_0 = arith.constant 0 : i32
    %c0_i32_1 = arith.constant 0 : i32
    %c0_i32_2 = arith.constant 0 : i32
    return %c0_i32, %c0_i32_0, %c0_i32_1 : i32, i32, i32
  }
  func.func @transform_4(%arg0: i32, %arg1: i32) -> (i32, i32) {
    %c0_i32 = arith.constant 0 : i32
    %c0_i32_0 = arith.constant 0 : i32
    %c0_i32_1 = arith.constant 0 : i32
    return %c0_i32, %c0_i32_0 : i32, i32
  }
  func.func @transform_5(%arg0: i32, %arg1: i32) -> (i32, i32) {
    %c0_i32 = arith.constant 0 : i32
    %c0_i32_0 = arith.constant 0 : i32
    %c0_i32_1 = arith.constant 0 : i32
    return %c0_i32, %c0_i32_0 : i32, i32
  }
  func.func @transform_6(%arg0: i32, %arg1: i32) -> (i32, i32) {
    %c0_i32 = arith.constant 0 : i32
    %c0_i32_0 = arith.constant 0 : i32
    %c0_i32_1 = arith.constant 0 : i32
    return %c0_i32, %c0_i32_0 : i32, i32
  }
  func.func @transform_7(%arg0: i32, %arg1: i32) -> (i32, i32) {
    %c0_i32 = arith.constant 0 : i32
    %c0_i32_0 = arith.constant 0 : i32
    %c0_i32_1 = arith.constant 0 : i32
    return %c0_i32, %c0_i32_0 : i32, i32
  }
  func.func @transform_8(%arg0: i32, %arg1: i32) -> (i32, i32) {
    %0 = arith.muli %arg0, %arg1 : i32
    %c0_i32 = arith.constant 0 : i32
    %c0_i32_0 = arith.constant 0 : i32
    return %0, %c0_i32 : i32, i32
  }
}

</mosaic_0001>

<llo_original>
// kernel: tpu_custom_call.1
$region0: #{tpu_custom_call.1}
  #allocation0 [shape = 'u32[]', space=smem, size = 0x4, offset = 0x4, fixed_abs, tag = 'smem constant byte address 0x4 - core index']
  #allocation1 [shape = 'u32[144,128]{1,0:T(1,128)}', space=vmem, size = 0x12000, scoped, tag = 'internal scratch']
  #allocation2 [shape = 'f32[16,128]{1,0:T(8,128)}', space=vmem, size = 0x2000, scoped, tag = 'scratch operand']
  %s0 = inlined_call_operand.hbm [shape: f32[16,12], index: 0, kind: input, shape index: {}]
  %s1 = inlined_call_operand.hbm [shape: f32[12,128], index: 1, kind: input, shape index: {}]
  %s2 = inlined_call_operand.vmem [shape: f32[1,128], index: 2, kind: input, shape index: {}]
  %s3 = inlined_call_operand.hbm [shape: f32[3,128,128], index: 3, kind: input, shape index: {}]
  %s4 = inlined_call_operand.vmem [shape: f32[3,128], index: 4, kind: input, shape index: {}]
  %s5 = inlined_call_operand.vmem [shape: f32[3,128], index: 5, kind: input, shape index: {}]
  %s6 = inlined_call_operand.hbm [shape: f32[128,128], index: 6, kind: input, shape index: {}]
  %s7 = inlined_call_operand.vmem [shape: f32[1,128], index: 7, kind: input, shape index: {}]
  %s8 = inlined_call_operand.hbm [shape: f32[16,128], index: 8, kind: output, shape index: {}]
  %s9 = sld [smem:[#allocation0]]
  $region93: #{tpu_custom_call.1} parent=0
    _
  %s11 = ssub.s32 1, %s9
  %s12 = scalar_select 0, %s11, %s9
  $region1: #{tpu_custom_call.1} parent=0
    #allocation3 [shape = 'u8[8192]{0}', space=vmem, size = 0x2000, scoped, tag = 'input window, operand 0']
    #allocation4 [shape = 's32[2]{0}', space=sflag, size = 0x8, scoped, tag = 'scoped memory for tpu_custom_call.1']
    #allocation5 [shape = 's32[2]{0}', space=sflag, size = 0x8, scoped, tag = 'scoped memory for tpu_custom_call.1']
    #allocation6 [shape = 'u8[8192]{0}', space=vmem, size = 0x2000, scoped, tag = 'input window, operand 1, single buffered']
    #allocation7 [shape = 's32[1]{0}', space=sflag, size = 0x4, scoped, tag = 'scoped memory for tpu_custom_call.1']
    #allocation8 [shape = 'u8[196608]{0}', space=vmem, size = 0x30000, scoped, tag = 'input window, operand 3, single buffered']
    #allocation9 [shape = 'u8[65536]{0}', space=vmem, size = 0x10000, scoped, tag = 'input window, operand 6, single buffered']
    #allocation10 [shape = 's32[1]{0}', space=sflag, size = 0x4, scoped, tag = 'scoped memory for tpu_custom_call.1']
    #allocation11 [shape = 'u8[8192]{0}', space=vmem, size = 0x2000, scoped, tag = 'output window, operand 0']
    %13 = vsyncpa [#allocation4], 0
    %s14 = scalar_lea.sflag [#allocation4], 1
    %15 = vsyncpa %s14, 0
    %16 = vsyncpa [#allocation7], 0
    %17 = vsyncpa [#allocation10], 0
    %18 = vsyncpa [#allocation5], 0
    %s19 = scalar_lea.sflag [#allocation5], 1
    %20 = vsyncpa %s19, 0
    loop: start=0, step=1, limit=6
    $region2: #{tpu_custom_call.1} parent=1 // loop_pre_header
      _
    $region3: #{tpu_custom_call.1} parent=1 // loop_header
      %s22 = sphi 0, %s26
      %p23 = scmp.ge.s32.totalorder %s22, 6
      %s29 = sphi 0, %s41
      %s30 = sphi 0, %s37
      %s31 = sphi 0, %s29
      %s32 = sphi 0, %s30
      %s33 = sphi 0, %s31
      %s34 = sphi 0, %s32
      %s48 = sphi 0, %s50
      %s51 = sphi 0, %s48
      %s52 = sphi 0, %s51
      %s68 = sphi 0, %s52
      %s72 = sphi 0, %s72
      %s74 = sphi 0, %s72
      %s75 = sphi 0, %s74
      %s89 = sphi 0, %s75
      %s93 = sphi 0, %s93
      %s95 = sphi 0, %s93
      %s96 = sphi 0, %s95
      %s110 = sphi 0, %s96
      %s114 = sphi 0, %s114
      %s116 = sphi 0, %s114
      %s117 = sphi 0, %s116
      %s131 = sphi 0, %s117
      %s135 = sphi 0, %s135
      %s137 = sphi 0, %s135
      %s138 = sphi 0, %s137
      %s152 = sphi 0, %s138
      %s156 = sphi 0, %s156
      %s158 = sphi 0, %s156
      %s159 = sphi 0, %s158
      %s173 = sphi 0, %s159
      %s177 = sphi 0, %s177
      %s179 = sphi 0, %s177
      %s180 = sphi 0, %s179
      %s194 = sphi 0, %s180
      %s198 = sphi 0, %s198
      %s200 = sphi 0, %s198
      %s201 = sphi 0, %s200
      %s215 = sphi 0, %s201
      %s223 = sphi 0, %s225
      %s226 = sphi 0, %s223
      %s227 = sphi 0, %s226
      %s243 = sphi 0, %s227
    $region4: #{tpu_custom_call.1} parent=1 // loop_header_branch
      %25 = sbr.rel (%p23) target = $region8
    $region5: #{tpu_custom_call.1} parent=1 // loop_body
      %s27 = ssub.s32 %s22, 1
      %s28 = ssub.s32 %s22, 2
      %s35 = sadd.s32 1, %s30
      %p36 = scmp.ge.s32.totalorder %s35, 2
      %s37 = scalar_select %p36, 0, %s35
      %s38 = sadd.s32 1, %s29
      %s39 = scalar_select %p36, %s38, %s29
      %p40 = scmp.ge.s32.totalorder %s39, 2
      %s41 = scalar_select %p40, 0, %s39
      %s42 = ssub.s32 1, %s29
      %s43 = smul.u32 %s42, %s30
      %s44 = ssub.s32 1, %s41
      %s45 = smul.u32 %s44, %s37
      %s46 = ssub.s32 %s43, %s45
      %p47 = scmp.eq.s32.totalorder %s46, 0
      %s49 = sadd.s32 %s48, 1
      %s50 = scalar_select %p47, %s48, %s49
      %p53 = pneg %p47
      %p54 = scmp.eq.s32.totalorder %s22, 3
      %p55 = por %p53, %p54
      %p56 = scmp.ne.s32.totalorder %s48, %s51
      %p57 = scmp.eq.s32.totalorder %s22, 0
      %p58 = por %p56, %p57
      %p59 = scmp.ne.s32.totalorder %s48, %s51
      %p60 = scmp.eq.s32.totalorder %s27, 3
      %p61 = por %p59, %p60
      %p62 = scmp.ne.s32.totalorder %s51, %s52
      %p63 = scmp.eq.s32.totalorder %s27, 0
      %p64 = por %p62, %p63
      %p65 = scmp.ne.s32.totalorder %s51, %s52
      %p66 = scmp.eq.s32.totalorder %s28, 3
      %p67 = por %p65, %p66
      %p69 = scmp.ne.s32.totalorder %s52, %s68
      %p70 = scmp.eq.s32.totalorder %s28, 0
      %p71 = por %p69, %p70
      %s73 = sadd.s32 %s72, 1
      %p76 = scmp.eq.s32.totalorder %s22, 3
      %p77 = scmp.ne.s32.totalorder %s72, %s74
      %p78 = scmp.eq.s32.totalorder %s22, 0
      %p79 = por %p77, %p78
      %p80 = scmp.ne.s32.totalorder %s72, %s74
      %p81 = scmp.eq.s32.totalorder %s27, 3
      %p82 = por %p80, %p81
      %p83 = scmp.ne.s32.totalorder %s74, %s75
      %p84 = scmp.eq.s32.totalorder %s27, 0
      %p85 = por %p83, %p84
      %p86 = scmp.ne.s32.totalorder %s74, %s75
      %p87 = scmp.eq.s32.totalorder %s28, 3
      %p88 = por %p86, %p87
      %p90 = scmp.ne.s32.totalorder %s75, %s89
      %p91 = scmp.eq.s32.totalorder %s28, 0
      %p92 = por %p90, %p91
      %s94 = sadd.s32 %s93, 1
      %p97 = scmp.eq.s32.totalorder %s22, 3
      %p98 = scmp.ne.s32.totalorder %s93, %s95
      %p99 = scmp.eq.s32.totalorder %s22, 0
      %p100 = por %p98, %p99
      %p101 = scmp.ne.s32.totalorder %s93, %s95
      %p102 = scmp.eq.s32.totalorder %s27, 3
      %p103 = por %p101, %p102
      %p104 = scmp.ne.s32.totalorder %s95, %s96
      %p105 = scmp.eq.s32.totalorder %s27, 0
      %p106 = por %p104, %p105
      %p107 = scmp.ne.s32.totalorder %s95, %s96
      %p108 = scmp.eq.s32.totalorder %s28, 3
      %p109 = por %p107, %p108
      %p111 = scmp.ne.s32.totalorder %s96, %s110
      %p112 = scmp.eq.s32.totalorder %s28, 0
      %p113 = por %p111, %p112
      %s115 = sadd.s32 %s114, 1
      %p118 = scmp.eq.s32.totalorder %s22, 3
      %p119 = scmp.ne.s32.totalorder %s114, %s116
      %p120 = scmp.eq.s32.totalorder %s22, 0
      %p121 = por %p119, %p120
      %p122 = scmp.ne.s32.totalorder %s114, %s116
      %p123 = scmp.eq.s32.totalorder %s27, 3
      %p124 = por %p122, %p123
      %p125 = scmp.ne.s32.totalorder %s116, %s117
      %p126 = scmp.eq.s32.totalorder %s27, 0
      %p127 = por %p125, %p126
      %p128 = scmp.ne.s32.totalorder %s116, %s117
      %p129 = scmp.eq.s32.totalorder %s28, 3
      %p130 = por %p128, %p129
      %p132 = scmp.ne.s32.totalorder %s117, %s131
      %p133 = scmp.eq.s32.totalorder %s28, 0
      %p134 = por %p132, %p133
      %s136 = sadd.s32 %s135, 1
      %p139 = scmp.eq.s32.totalorder %s22, 3
      %p140 = scmp.ne.s32.totalorder %s135, %s137
      %p141 = scmp.eq.s32.totalorder %s22, 0
      %p142 = por %p140, %p141
      %p143 = scmp.ne.s32.totalorder %s135, %s137
      %p144 = scmp.eq.s32.totalorder %s27, 3
      %p145 = por %p143, %p144
      %p146 = scmp.ne.s32.totalorder %s137, %s138
      %p147 = scmp.eq.s32.totalorder %s27, 0
      %p148 = por %p146, %p147
      %p149 = scmp.ne.s32.totalorder %s137, %s138
      %p150 = scmp.eq.s32.totalorder %s28, 3
      %p151 = por %p149, %p150
      %p153 = scmp.ne.s32.totalorder %s138, %s152
      %p154 = scmp.eq.s32.totalorder %s28, 0
      %p155 = por %p153, %p154
      %s157 = sadd.s32 %s156, 1
      %p160 = scmp.eq.s32.totalorder %s22, 3
      %p161 = scmp.ne.s32.totalorder %s156, %s158
      %p162 = scmp.eq.s32.totalorder %s22, 0
      %p163 = por %p161, %p162
      %p164 = scmp.ne.s32.totalorder %s156, %s158
      %p165 = scmp.eq.s32.totalorder %s27, 3
      %p166 = por %p164, %p165
      %p167 = scmp.ne.s32.totalorder %s158, %s159
      %p168 = scmp.eq.s32.totalorder %s27, 0
      %p169 = por %p167, %p168
      %p170 = scmp.ne.s32.totalorder %s158, %s159
      %p171 = scmp.eq.s32.totalorder %s28, 3
      %p172 = por %p170, %p171
      %p174 = scmp.ne.s32.totalorder %s159, %s173
      %p175 = scmp.eq.s32.totalorder %s28, 0
      %p176 = por %p174, %p175
      %s178 = sadd.s32 %s177, 1
      %p181 = scmp.eq.s32.totalorder %s22, 3
      %p182 = scmp.ne.s32.totalorder %s177, %s179
      %p183 = scmp.eq.s32.totalorder %s22, 0
      %p184 = por %p182, %p183
      %p185 = scmp.ne.s32.totalorder %s177, %s179
      %p186 = scmp.eq.s32.totalorder %s27, 3
      %p187 = por %p185, %p186
      %p188 = scmp.ne.s32.totalorder %s179, %s180
      %p189 = scmp.eq.s32.totalorder %s27, 0
      %p190 = por %p188, %p189
      %p191 = scmp.ne.s32.totalorder %s179, %s180
      %p192 = scmp.eq.s32.totalorder %s28, 3
      %p193 = por %p191, %p192
      %p195 = scmp.ne.s32.totalorder %s180, %s194
      %p196 = scmp.eq.s32.totalorder %s28, 0
      %p197 = por %p195, %p196
      %s199 = sadd.s32 %s198, 1
      %p202 = scmp.eq.s32.totalorder %s22, 3
      %p203 = scmp.ne.s32.totalorder %s198, %s200
      %p204 = scmp.eq.s32.totalorder %s22, 0
      %p205 = por %p203, %p204
      %p206 = scmp.ne.s32.totalorder %s198, %s200
      %p207 = scmp.eq.s32.totalorder %s27, 3
      %p208 = por %p206, %p207
      %p209 = scmp.ne.s32.totalorder %s200, %s201
      %p210 = scmp.eq.s32.totalorder %s27, 0
      %p211 = por %p209, %p210
      %p212 = scmp.ne.s32.totalorder %s200, %s201
      %p213 = scmp.eq.s32.totalorder %s28, 3
      %p214 = por %p212, %p213
      %p216 = scmp.ne.s32.totalorder %s201, %s215
      %p217 = scmp.eq.s32.totalorder %s28, 0
      %p218 = por %p216, %p217
      %s219 = smul.u32 %s29, %s30
      %s220 = smul.u32 %s41, %s37
      %s221 = ssub.s32 %s219, %s220
      %p222 = scmp.eq.s32.totalorder %s221, 0
      %s224 = sadd.s32 %s223, 1
      %s225 = scalar_select %p222, %s223, %s224
      %p228 = pneg %p222
      %p229 = scmp.eq.s32.totalorder %s22, 3
      %p230 = por %p228, %p229
      %p231 = scmp.ne.s32.totalorder %s223, %s226
      %p232 = scmp.eq.s32.totalorder %s22, 0
      %p233 = por %p231, %p232
      %p234 = scmp.ne.s32.totalorder %s223, %s226
      %p235 = scmp.eq.s32.totalorder %s27, 3
      %p236 = por %p234, %p235
      %p237 = scmp.ne.s32.totalorder %s226, %s227
      %p238 = scmp.eq.s32.totalorder %s27, 0
      %p239 = por %p237, %p238
      %p240 = scmp.ne.s32.totalorder %s226, %s227
      %p241 = scmp.eq.s32.totalorder %s28, 3
      %p242 = por %p240, %p241
      %p244 = scmp.ne.s32.totalorder %s227, %s243
      %p245 = scmp.eq.s32.totalorder %s28, 0
      %p246 = por %p244, %p245
      %p247 = scmp.le.s32.totalorder 1, %s22
      %p248 = scmp.lt.s32.totalorder %s22, 5
      %p249 = pnand %p247, %p248
      %p250 = pneg %p249
      // Predicated region
      $region9: #{tpu_custom_call.1} parent=5 // pred_check
        _
      $region10: #{tpu_custom_call.1} parent=5 // pred_check_branch
        %252 = sbr.rel (%p249) target = $region12
      $region11: #{tpu_custom_call.1} parent=5 // pred_region
        %s253 = ssub.s32 %s22, 1
        // Predicated region
        $region13: #{tpu_custom_call.1} parent=11 // pred_check
          %p254 = pneg %p85
        $region14: #{tpu_custom_call.1} parent=11 // pred_check_branch
          %256 = sbr.rel (%p254) target = $region16
        $region15: #{tpu_custom_call.1} parent=11 // pred_region
          %s258 = ssub.s32 256, 256
          %259 = vsyncadd [#allocation7], %s258
          %s260 = sshll.u32 [#allocation6], 4
          %s261 = int_to_ptr.vmem [resolvable:$true] %s260
          %266 = dma.hbm_to_vmem [thread:$0]  %s1, 256, %s261, [#allocation7], 128, 128, 8
        $region16: #{tpu_custom_call.1} parent=11 // pred_fallthru
          _
        // Predicated region
        $region17: #{tpu_custom_call.1} parent=11 // pred_check
          %p267 = pneg %p106
        $region18: #{tpu_custom_call.1} parent=11 // pred_check_branch
          %269 = sbr.rel (%p267) target = $region20
        $region19: #{tpu_custom_call.1} parent=11 // pred_region
          _
        $region20: #{tpu_custom_call.1} parent=11 // pred_fallthru
          _
        // Predicated region
        $region21: #{tpu_custom_call.1} parent=11 // pred_check
          %p270 = pneg %p127
        $region22: #{tpu_custom_call.1} parent=11 // pred_check_branch
          %272 = sbr.rel (%p270) target = $region24
        $region23: #{tpu_custom_call.1} parent=11 // pred_region
          %s274 = ssub.s32 6144, 6144
          %275 = vsyncadd [#allocation7], %s274
          %s276 = sshll.u32 [#allocation8], 4
          %s277 = int_to_ptr.vmem [resolvable:$true] %s276
          %282 = dma.hbm_to_vmem [thread:$0]  %s3, 6144, %s277, [#allocation7], 128, 128, 8
        $region24: #{tpu_custom_call.1} parent=11 // pred_fallthru
          _
        // Predicated region
        $region25: #{tpu_custom_call.1} parent=11 // pred_check
          %p283 = pneg %p148
        $region26: #{tpu_custom_call.1} parent=11 // pred_check_branch
          %285 = sbr.rel (%p283) target = $region28
        $region27: #{tpu_custom_call.1} parent=11 // pred_region
          _
        $region28: #{tpu_custom_call.1} parent=11 // pred_fallthru
          _
        // Predicated region
        $region29: #{tpu_custom_call.1} parent=11 // pred_check
          %p286 = pneg %p169
        $region30: #{tpu_custom_call.1} parent=11 // pred_check_branch
          %288 = sbr.rel (%p286) target = $region32
        $region31: #{tpu_custom_call.1} parent=11 // pred_region
          _
        $region32: #{tpu_custom_call.1} parent=11 // pred_fallthru
          _
        // Predicated region
        $region33: #{tpu_custom_call.1} parent=11 // pred_check
          %p289 = pneg %p190
        $region34: #{tpu_custom_call.1} parent=11 // pred_check_branch
          %291 = sbr.rel (%p289) target = $region36
        $region35: #{tpu_custom_call.1} parent=11 // pred_region
          %s293 = ssub.s32 2048, 2048
          %294 = vsyncadd [#allocation10], %s293
          %s295 = sshll.u32 [#allocation9], 4
          %s296 = int_to_ptr.vmem [resolvable:$true] %s295
          %301 = dma.hbm_to_vmem [thread:$0]  %s6, 2048, %s296, [#allocation10], 128, 128, 8
        $region36: #{tpu_custom_call.1} parent=11 // pred_fallthru
          _
        // Predicated region
        $region37: #{tpu_custom_call.1} parent=11 // pred_check
          %p302 = pneg %p211
        $region38: #{tpu_custom_call.1} parent=11 // pred_check_branch
          %304 = sbr.rel (%p302) target = $region40
        $region39: #{tpu_custom_call.1} parent=11 // pred_region
          _
        $region40: #{tpu_custom_call.1} parent=11 // pred_fallthru
          _
      $region12: #{tpu_custom_call.1} parent=5 // pred_fallthru
        _
      %p305 = scmp.lt.s32.totalorder %s22, 4
      // Predicated region
      $region41: #{tpu_custom_call.1} parent=5 // pred_check
        %p306 = pneg %p305
      $region42: #{tpu_custom_call.1} parent=5 // pred_check_branch
        %308 = sbr.rel (%p306) target = $region44
      $region43: #{tpu_custom_call.1} parent=5 // pred_region
        // Predicated region
        $region45: #{tpu_custom_call.1} parent=43 // pred_check
          %p309 = pneg %p58
        $region46: #{tpu_custom_call.1} parent=43 // pred_check_branch
          %311 = sbr.rel (%p309) target = $region48
        $region47: #{tpu_custom_call.1} parent=43 // pred_region
          %s312 = sand.u32 %s48, 1
          %s313 = scalar_lea.sflag [#allocation4], %s312
          %s314 = sand.u32 %s48, 1
          %s315 = smul.addr %s314, 8
          %s316 = scalar_lea.vmem [#allocation3], %s315
          %s317 = ssub.s32 1, %s29
          %s318 = smul.u32 %s317, %s30
          %s320 = ssub.s32 128, 128
          %321 = vsyncadd %s313, %s320
          %s322 = smul.addr %s318, 128
          %s323 = scalar_lea.hbm %s0, %s322
          %s325 = sshll.u32 %s316, 4
          %s326 = int_to_ptr.vmem [resolvable:$true] %s325
          %328 = dma.hbm_to_vmem [thread:$0]  %s323, 128, %s326, %s313
        $region48: #{tpu_custom_call.1} parent=43 // pred_fallthru
          _
      $region44: #{tpu_custom_call.1} parent=5 // pred_fallthru
        _
      %p329 = scmp.le.s32.totalorder 1, %s22
      %p330 = scmp.lt.s32.totalorder %s22, 5
      %p331 = pnand %p329, %p330
      %p332 = pneg %p331
      // Predicated region
      $region49: #{tpu_custom_call.1} parent=5 // pred_check
        _
      $region50: #{tpu_custom_call.1} parent=5 // pred_check_branch
        %334 = sbr.rel (%p331) target = $region52
      $region51: #{tpu_custom_call.1} parent=5 // pred_region
        %s335 = ssub.s32 %s22, 1
        %s336 = sand.u32 %s51, 1
        %s337 = scalar_lea.sflag [#allocation4], %s336
        %s338 = sand.u32 %s51, 1
        %s339 = smul.addr %s338, 8
        %s340 = scalar_lea.vmem [#allocation3], %s339
        // Predicated region
        $region53: #{tpu_custom_call.1} parent=51 // pred_check
          %p341 = pneg %p64
        $region54: #{tpu_custom_call.1} parent=51 // pred_check_branch
          %343 = sbr.rel (%p341) target = $region56
        $region55: #{tpu_custom_call.1} parent=51 // pred_region
          %344 = dma.done %s337, 128
        $region56: #{tpu_custom_call.1} parent=51 // pred_fallthru
          _
        // Predicated region
        $region57: #{tpu_custom_call.1} parent=51 // pred_check
          %p345 = pneg %p85
        $region58: #{tpu_custom_call.1} parent=51 // pred_check_branch
          %347 = sbr.rel (%p345) target = $region60
        $region59: #{tpu_custom_call.1} parent=51 // pred_region
          %348 = dma.done [#allocation7], 256
        $region60: #{tpu_custom_call.1} parent=51 // pred_fallthru
          _
        // Predicated region
        $region61: #{tpu_custom_call.1} parent=51 // pred_check
          %p349 = pneg %p127
        $region62: #{tpu_custom_call.1} parent=51 // pred_check_branch
          %351 = sbr.rel (%p349) target = $region64
        $region63: #{tpu_custom_call.1} parent=51 // pred_region
          %352 = dma.done [#allocation7], 6144
        $region64: #{tpu_custom_call.1} parent=51 // pred_fallthru
          _
        // Predicated region
        $region65: #{tpu_custom_call.1} parent=51 // pred_check
          %p353 = pneg %p190
        $region66: #{tpu_custom_call.1} parent=51 // pred_check_branch
          %355 = sbr.rel (%p353) target = $region68
        $region67: #{tpu_custom_call.1} parent=51 // pred_region
          %356 = dma.done [#allocation10], 2048
        $region68: #{tpu_custom_call.1} parent=51 // pred_fallthru
          _
        %s357 = sand.u32 %s51, 1
        %s358 = scalar_lea.sflag [#allocation4], %s357
        %s359 = sand.u32 %s51, 1
        %s360 = smul.addr %s359, 8
        %s361 = scalar_lea.vmem [#allocation3], %s360
        %p362 = pneg %p64
        %p363 = pneg %p61
        %p364 = pneg %p85
        %p365 = pneg %p82
        %p366 = pneg %p106
        %p367 = pneg %p103
        %p368 = pneg %p127
        %p369 = pneg %p124
        %p370 = pneg %p148
        %p371 = pneg %p145
        %p372 = pneg %p169
        %p373 = pneg %p166
        %p374 = pneg %p190
        %p375 = pneg %p187
        %p376 = pneg %p211
        %p377 = pneg %p208
        %p378 = pneg %p239
        %p379 = pneg %p236
        %s380 = sand.u32 %s226, 1
        %s381 = scalar_lea.sflag [#allocation5], %s380
        %s382 = sand.u32 %s226, 1
        %s383 = smul.addr %s382, 8
        %s384 = scalar_lea.vmem [#allocation11], %s383
        %s385 = ssub.s32 1, %s31
        %s386 = smul.u32 %s385, %s32
        %s387 = smul.u32 %s31, %s32
        %s388 = smul.u32 %s32, 8
        %p389 = scmp.eq.s32.totalorder %s31, 0
        // Predicated region
        $region69: #{tpu_custom_call.1} parent=51 // pred_check
          %p390 = pneg %p389
        $region70: #{tpu_custom_call.1} parent=51 // pred_check_branch
          %392 = sbr.rel (%p390) target = $region72
        $region71: #{tpu_custom_call.1} parent=51 // pred_region
          %v393 = vld [vmem:[%s340] sm:$0xff]
          %v394 = vld [vmem:[#allocation6] sm:$0xff]
          %v395 = vld [vmem:[#allocation6 + $0x8] sm:$0xf]
          %v396 = vld [vmem:[%s2] sm:$0x1]
          %v398 = vlaneseq
          %v399 = vshrl.u32 %v398, 7
          %v400 = vsub.s32 0, %v399
          %v401 = vrot.slane %v396, %v400
          %vm403 = vcmask 97280
          %v405 = vsel %vm403, %v393, 0
          %vm407 = vcmask 1043456
          %v409 = vsel %vm407, %v395, 0
          %411 = vmatprep.subr.mxu0 0.0
          %412 = vmatpush1.msra.mxu0 %v394
          %413 = vmatprep.subr.mxu0 0.0
          %414 = vmatpush1.msra.mxu0 %v409
          %415 = vmatprep.subr.mxu0 0.0
          %416 = vmatpush1.msra.mxu0 0.0
          %417 = vmatprep.subr.mxu0 0.0
          %418 = vmatpush1.msra.mxu0 0.0
          %419 = vmatprep.subr.mxu0 0.0
          %420 = vmatpush1.msra.mxu0 0.0
          %421 = vmatprep.subr.mxu0 0.0
          %422 = vmatpush1.msra.mxu0 0.0
          %423 = vmatprep.subr.mxu0 0.0
          %424 = vmatpush1.msra.mxu0 0.0
          %425 = vmatprep.subr.mxu0 0.0
          %426 = vmatpush1.msra.mxu0 0.0
          %427 = vmatprep.subr.mxu0 0.0
          %428 = vmatpush1.msra.mxu0 0.0
          %429 = vmatprep.subr.mxu0 0.0
          %430 = vmatpush1.msra.mxu0 0.0
          %431 = vmatprep.subr.mxu0 0.0
          %432 = vmatpush1.msra.mxu0 0.0
          %433 = vmatprep.subr.mxu0 0.0
          %434 = vmatpush1.msra.mxu0 0.0
          %435 = vmatprep.subr.mxu0 0.0
          %436 = vmatpush1.msra.mxu0 0.0
          %437 = vmatprep.subr.mxu0 0.0
          %438 = vmatpush1.msra.mxu0 0.0
          %439 = vmatprep.subr.mxu0 0.0
          %440 = vmatpush1.msra.mxu0 0.0
          %441 = vmatprep.subr.mxu0 0.0
          %442 = vmatpush1.msra.mxu0 0.0
          %443 = vmatprep.subr.mxu0 0.0
          %444 = vmatpush1.msra.mxu0 0.0
          %445 = vmatprep.subr.mxu0 0.0
          %446 = vmatpush1.msra.mxu0 0.0
          %447 = vmatprep.subr.mxu0 0.0
          %448 = vmatpush1.msra.mxu0 0.0
          %449 = vmatprep.subr.mxu0 0.0
          %450 = vmatpush1.msra.mxu0 0.0
          %451 = vmatprep.subr.mxu0 0.0
          %452 = vmatpush1.msra.mxu0 0.0
          %453 = vmatprep.subr.mxu0 0.0
          %454 = vmatpush1.msra.mxu0 0.0
          %455 = vmatprep.subr.mxu0 0.0
          %456 = vmatpush1.msra.mxu0 0.0
          %457 = vmatprep.subr.mxu0 0.0
          %458 = vmatpush1.msra.mxu0 0.0
          %459 = vmatprep.subr.mxu0 0.0
          %460 = vmatpush1.msra.mxu0 0.0
          %461 = vmatprep.subr.mxu0 0.0
          %462 = vmatpush1.msra.mxu0 0.0
          %463 = vmatprep.subr.mxu0 0.0
          %464 = vmatpush1.msra.mxu0 0.0
          %465 = vmatprep.subr.mxu0 0.0
          %466 = vmatpush1.msra.mxu0 0.0
          %467 = vmatprep.subr.mxu0 0.0
          %468 = vmatpush1.msra.mxu0 0.0
          %469 = vmatprep.subr.mxu0 0.0
          %470 = vmatpush1.msra.mxu0 0.0
          %471 = vmatprep.subr.mxu0 0.0
          %472 = vmatpush1.msra.mxu0 0.0
          %473 = vmatprep.subr.mxu0 0.0
          %474 = vmatpush1.msra.mxu0 0.0
          %475 = vmatprep.mubr.f32.mxu0 0.0
          %476 = vmatmul.mubr.f32.gmra.mrb[0].mxu0 %v405
          %v477 = vpop.f32.mrb[0].mxu0
          %v478 = vadd.f32 %v401, %v477
          %v479 = vpop.f32.mrb[0].mxu0
          %480 = vdwg.mxu0
          %v481 = vmax.f32 %v478, 0.0
          %s482 = scalar_lea.vmem [#allocation2], %s388
          %483 = vst [vmem:[%s482] sm:$0xff] %v481
        $region72: #{tpu_custom_call.1} parent=51 // pred_fallthru
          _
        %p484 = scmp.eq.s32.totalorder %s31, 1
        %p485 = scmp.eq.s32.totalorder %s32, 0
        %p486 = pnand %p484, %p485
        %p487 = pneg %p486
        // Predicated region
        $region73: #{tpu_custom_call.1} parent=51 // pred_check
          _
        $region74: #{tpu_custom_call.1} parent=51 // pred_check_branch
          %489 = sbr.rel (%p486) target = $region76
        $region75: #{tpu_custom_call.1} parent=51 // pred_region
          %v490 = vld [vmem:[#allocation2] sm:$0xff]
          %v491 = vld [vmem:[#allocation2 + $0x8] sm:$0xff]
          %v492 = vld [vmem:[#allocation8] sm:$0xff]
          %v493 = vld [vmem:[#allocation8 + $0x8] sm:$0xff]
          %v494 = vld [vmem:[#allocation8 + $0x10] sm:$0xff]
          %v495 = vld [vmem:[#allocation8 + $0x18] sm:$0xff]
          %v496 = vld [vmem:[#allocation8 + $0x20] sm:$0xff]
          %v497 = vld [vmem:[#allocation8 + $0x28] sm:$0xff]
          %v498 = vld [vmem:[#allocation8 + $0x30] sm:$0xff]
          %v499 = vld [vmem:[#allocation8 + $0x38] sm:$0xff]
          %v500 = vld [vmem:[#allocation8 + $0x40] sm:$0xff]
          %v501 = vld [vmem:[#allocation8 + $0x48] sm:$0xff]
          %v502 = vld [vmem:[#allocation8 + $0x50] sm:$0xff]
          %v503 = vld [vmem:[#allocation8 + $0x58] sm:$0xff]
          %v504 = vld [vmem:[#allocation8 + $0x60] sm:$0xff]
          %v505 = vld [vmem:[#allocation8 + $0x68] sm:$0xff]
          %v506 = vld [vmem:[#allocation8 + $0x70] sm:$0xff]
          %v507 = vld [vmem:[#allocation8 + $0x78] sm:$0xff]
          %508 = vmatprep.subr.mxu0 0.0
          %509 = vmatpush1.msra.mxu0 %v492
          %510 = vmatprep.subr.mxu0 0.0
          %511 = vmatpush1.msra.mxu0 %v493
          %512 = vmatprep.subr.mxu0 0.0
          %513 = vmatpush1.msra.mxu0 %v494
          %514 = vmatprep.subr.mxu0 0.0
          %515 = vmatpush1.msra.mxu0 %v495
          %516 = vmatprep.subr.mxu0 0.0
          %517 = vmatpush1.msra.mxu0 %v496
          %518 = vmatprep.subr.mxu0 0.0
          %519 = vmatpush1.msra.mxu0 %v497
          %520 = vmatprep.subr.mxu0 0.0
          %521 = vmatpush1.msra.mxu0 %v498
          %522 = vmatprep.subr.mxu0 0.0
          %523 = vmatpush1.msra.mxu0 %v499
          %524 = vmatprep.subr.mxu0 0.0
          %525 = vmatpush1.msra.mxu0 %v500
          %526 = vmatprep.subr.mxu0 0.0
          %527 = vmatpush1.msra.mxu0 %v501
          %528 = vmatprep.subr.mxu0 0.0
          %529 = vmatpush1.msra.mxu0 %v502
          %530 = vmatprep.subr.mxu0 0.0
          %531 = vmatpush1.msra.mxu0 %v503
          %532 = vmatprep.subr.mxu0 0.0
          %533 = vmatpush1.msra.mxu0 %v504
          %534 = vmatprep.subr.mxu0 0.0
          %535 = vmatpush1.msra.mxu0 %v505
          %536 = vmatprep.subr.mxu0 0.0
          %537 = vmatpush1.msra.mxu0 %v506
          %538 = vmatprep.subr.mxu0 0.0
          %539 = vmatpush1.msra.mxu0 %v507
          %540 = vmatprep.subr.mxu0 0.0
          %541 = vmatpush1.msra.mxu0 0.0
          %542 = vmatprep.subr.mxu0 0.0
          %543 = vmatpush1.msra.mxu0 0.0
          %544 = vmatprep.subr.mxu0 0.0
          %545 = vmatpush1.msra.mxu0 0.0
          %546 = vmatprep.subr.mxu0 0.0
          %547 = vmatpush1.msra.mxu0 0.0
          %548 = vmatprep.subr.mxu0 0.0
          %549 = vmatpush1.msra.mxu0 0.0
          %550 = vmatprep.subr.mxu0 0.0
          %551 = vmatpush1.msra.mxu0 0.0
          %552 = vmatprep.subr.mxu0 0.0
          %553 = vmatpush1.msra.mxu0 0.0
          %554 = vmatprep.subr.mxu0 0.0
          %555 = vmatpush1.msra.mxu0 0.0
          %556 = vmatprep.subr.mxu0 0.0
          %557 = vmatpush1.msra.mxu0 0.0
          %558 = vmatprep.subr.mxu0 0.0
          %559 = vmatpush1.msra.mxu0 0.0
          %560 = vmatprep.subr.mxu0 0.0
          %561 = vmatpush1.msra.mxu0 0.0
          %562 = vmatprep.subr.mxu0 0.0
          %563 = vmatpush1.msra.mxu0 0.0
          %564 = vmatprep.subr.mxu0 0.0
          %565 = vmatpush1.msra.mxu0 0.0
          %566 = vmatprep.subr.mxu0 0.0
          %567 = vmatpush1.msra.mxu0 0.0
          %568 = vmatprep.subr.mxu0 0.0
          %569 = vmatpush1.msra.mxu0 0.0
          %570 = vmatprep.subr.mxu0 0.0
          %571 = vmatpush1.msra.mxu0 0.0
          %572 = vmatprep.mubr.f32.mxu0 0.0
          %573 = vmatmul.mubr.f32.gmra.mrb[0].mxu0 %v490
          %v574 = vpop.f32.mrb[0].mxu0
          %v575 = vadd.f32 0.0, %v574
          %v576 = vpop.f32.mrb[0].mxu0
          %577 = vmatprep.mubr.f32.mxu0 0.0
          %578 = vmatmul.mubr.f32.gmra.mrb[0].mxu0 %v491
          %v579 = vpop.f32.mrb[0].mxu0
          %v580 = vadd.f32 0.0, %v579
          %v581 = vpop.f32.mrb[0].mxu0
          %582 = vdwg.mxu0
          %v583 = vadd.f32 %v575, %v580
          %v584 = vrot.slane %v583, 4
          %v585 = vadd.f32 %v583, %v584
          %v586 = vrot.slane %v585, 2
          %v587 = vadd.f32 %v585, %v586
          %v588 = vrot.slane %v587, 1
          %v589 = vadd.f32 %v587, %v588
          %591 = vrot.lane.b32.xlu0 %v589, 96
          %v592 = vpop.permute.xlu0 %591
          %v594 = vadd.f32 %v589, %v592
          %595 = vrot.lane.b32.xlu0 %v589, 64
          %v596 = vpop.permute.xlu0 %595
          %v598 = vadd.f32 %v594, %v596
          %599 = vrot.lane.b32.xlu0 %v589, 32
          %v600 = vpop.permute.xlu0 %599
          %v602 = vadd.f32 %v598, %v600
          %604 = vrot.lane.b32.xlu0 %v602, 32
          %v605 = vpop.permute.xlu0 %604
          %607 = vrot.lane.b32.xlu0 %v602, 64
          %v608 = vpop.permute.xlu0 %607
          %610 = vrot.lane.b32.xlu0 %v602, 96
          %v611 = vpop.permute.xlu0 %610
          %vm613 = vcmask 261120
          %v614 = vsel %vm613, %v602, %v605
          %vm615 = vcmask 523264
          %v616 = vsel %vm615, %v614, %v608
          %vm617 = vcmask 785408
          %v618 = vsel %vm617, %v616, %v611
          %v619 = vmul.f32 %v575, %v575
          %v620 = vmul.f32 %v580, %v580
          %v621 = vadd.f32 %v619, %v620
          %v622 = vrot.slane %v621, 4
          %v623 = vadd.f32 %v621, %v622
          %v624 = vrot.slane %v623, 2
          %v625 = vadd.f32 %v623, %v624
          %v626 = vrot.slane %v625, 1
          %v627 = vadd.f32 %v625, %v626
          %629 = vrot.lane.b32.xlu0 %v627, 96
          %v630 = vpop.permute.xlu0 %629
          %v632 = vadd.f32 %v627, %v630
          %633 = vrot.lane.b32.xlu0 %v627, 64
          %v634 = vpop.permute.xlu0 %633
          %v636 = vadd.f32 %v632, %v634
          %637 = vrot.lane.b32.xlu0 %v627, 32
          %v638 = vpop.permute.xlu0 %637
          %v640 = vadd.f32 %v636, %v638
          %642 = vrot.lane.b32.xlu0 %v640, 32
          %v643 = vpop.permute.xlu0 %642
          %645 = vrot.lane.b32.xlu0 %v640, 64
          %v646 = vpop.permute.xlu0 %645
          %648 = vrot.lane.b32.xlu0 %v640, 96
          %v649 = vpop.permute.xlu0 %648
          %v651 = vsel %vm613, %v640, %v643
          %v652 = vsel %vm615, %v651, %v646
          %v653 = vsel %vm617, %v652, %v649
          %v654 = vmul.f32 %v618, 0.015625
          %v655 = vmul.f32 %v653, 0.015625
          %v656 = vmul.f32 %v654, %v654
          %v657 = vsub.f32 %v655, %v656
          %v658 = vld [vmem:[%s4] sm:$0x1]
          %v659 = vadd.f32 %v657, 1e-05
          %v660 = vrsqrt.pop %v659
          %v661 = vmul.f32 %v658, %v660
          %v662 = vld [vmem:[%s5] sm:$0x1]
          %v663 = vmul.f32 %v654, %v661
          %v664 = vsub.f32 %v662, %v663
          %v665 = vlaneseq
          %v666 = vshrl.u32 %v665, 7
          %v667 = vsub.s32 0, %v666
          %v668 = vrot.slane %v661, %v667
          %v669 = vmul.f32 %v575, %v668
          %v670 = vmul.f32 %v580, %v668
          %v671 = vlaneseq
          %v672 = vshrl.u32 %v671, 7
          %v673 = vsub.s32 0, %v672
          %v674 = vrot.slane %v664, %v673
          %v675 = vadd.f32 %v669, %v674
          %v676 = vadd.f32 %v670, %v674
          %v677 = vmax.f32 %v675, 0.0
          %v678 = vmax.f32 %v676, 0.0
          %v679 = vadd.f32 %v677, %v490
          %v680 = vadd.f32 %v678, %v491
          %s681 = scalar_lea.vmem [#allocation8], 128
          %v682 = vld [vmem:[%s681] sm:$0xff]
          %v683 = vld [vmem:[%s681 + $0x8] sm:$0xff]
          %v684 = vld [vmem:[%s681 + $0x10] sm:$0xff]
          %v685 = vld [vmem:[%s681 + $0x18] sm:$0xff]
          %v686 = vld [vmem:[%s681 + $0x20] sm:$0xff]
          %v687 = vld [vmem:[%s681 + $0x28] sm:$0xff]
          %v688 = vld [vmem:[%s681 + $0x30] sm:$0xff]
          %v689 = vld [vmem:[%s681 + $0x38] sm:$0xff]
          %v690 = vld [vmem:[%s681 + $0x40] sm:$0xff]
          %v691 = vld [vmem:[%s681 + $0x48] sm:$0xff]
          %v692 = vld [vmem:[%s681 + $0x50] sm:$0xff]
          %v693 = vld [vmem:[%s681 + $0x58] sm:$0xff]
          %v694 = vld [vmem:[%s681 + $0x60] sm:$0xff]
          %v695 = vld [vmem:[%s681 + $0x68] sm:$0xff]
          %v696 = vld [vmem:[%s681 + $0x70] sm:$0xff]
          %v697 = vld [vmem:[%s681 + $0x78] sm:$0xff]
          %698 = vmatprep.subr.mxu0 0.0
          %699 = vmatpush1.msra.mxu0 %v682
          %700 = vmatprep.subr.mxu0 0.0
          %701 = vmatpush1.msra.mxu0 %v683
          %702 = vmatprep.subr.mxu0 0.0
          %703 = vmatpush1.msra.mxu0 %v684
          %704 = vmatprep.subr.mxu0 0.0
          %705 = vmatpush1.msra.mxu0 %v685
          %706 = vmatprep.subr.mxu0 0.0
          %707 = vmatpush1.msra.mxu0 %v686
          %708 = vmatprep.subr.mxu0 0.0
          %709 = vmatpush1.msra.mxu0 %v687
          %710 = vmatprep.subr.mxu0 0.0
          %711 = vmatpush1.msra.mxu0 %v688
          %712 = vmatprep.subr.mxu0 0.0
          %713 = vmatpush1.msra.mxu0 %v689
          %714 = vmatprep.subr.mxu0 0.0
          %715 = vmatpush1.msra.mxu0 %v690
          %716 = vmatprep.subr.mxu0 0.0
          %717 = vmatpush1.msra.mxu0 %v691
          %718 = vmatprep.subr.mxu0 0.0
          %719 = vmatpush1.msra.mxu0 %v692
          %720 = vmatprep.subr.mxu0 0.0
          %721 = vmatpush1.msra.mxu0 %v693
          %722 = vmatprep.subr.mxu0 0.0
          %723 = vmatpush1.msra.mxu0 %v694
          %724 = vmatprep.subr.mxu0 0.0
          %725 = vmatpush1.msra.mxu0 %v695
          %726 = vmatprep.subr.mxu0 0.0
          %727 = vmatpush1.msra.mxu0 %v696
          %728 = vmatprep.subr.mxu0 0.0
          %729 = vmatpush1.msra.mxu0 %v697
          %730 = vmatprep.subr.mxu0 0.0
          %731 = vmatpush1.msra.mxu0 0.0
          %732 = vmatprep.subr.mxu0 0.0
          %733 = vmatpush1.msra.mxu0 0.0
          %734 = vmatprep.subr.mxu0 0.0
          %735 = vmatpush1.msra.mxu0 0.0
          %736 = vmatprep.subr.mxu0 0.0
          %737 = vmatpush1.msra.mxu0 0.0
          %738 = vmatprep.subr.mxu0 0.0
          %739 = vmatpush1.msra.mxu0 0.0
          %740 = vmatprep.subr.mxu0 0.0
          %741 = vmatpush1.msra.mxu0 0.0
          %742 = vmatprep.subr.mxu0 0.0
          %743 = vmatpush1.msra.mxu0 0.0
          %744 = vmatprep.subr.mxu0 0.0
          %745 = vmatpush1.msra.mxu0 0.0
          %746 = vmatprep.subr.mxu0 0.0
          %747 = vmatpush1.msra.mxu0 0.0
          %748 = vmatprep.subr.mxu0 0.0
          %749 = vmatpush1.msra.mxu0 0.0
          %750 = vmatprep.subr.mxu0 0.0
          %751 = vmatpush1.msra.mxu0 0.0
          %752 = vmatprep.subr.mxu0 0.0
          %753 = vmatpush1.msra.mxu0 0.0
          %754 = vmatprep.subr.mxu0 0.0
          %755 = vmatpush1.msra.mxu0 0.0
          %756 = vmatprep.subr.mxu0 0.0
          %757 = vmatpush1.msra.mxu0 0.0
          %758 = vmatprep.subr.mxu0 0.0
          %759 = vmatpush1.msra.mxu0 0.0
          %760 = vmatprep.subr.mxu0 0.0
          %761 = vmatpush1.msra.mxu0 0.0
          %762 = vmatprep.mubr.f32.mxu0 0.0
          %763 = vmatmul.mubr.f32.gmra.mrb[0].mxu0 %v679
          %v764 = vpop.f32.mrb[0].mxu0
          %v765 = vadd.f32 0.0, %v764
          %v766 = vpop.f32.mrb[0].mxu0
          %767 = vmatprep.mubr.f32.mxu0 0.0
          %768 = vmatmul.mubr.f32.gmra.mrb[0].mxu0 %v680
          %v769 = vpop.f32.mrb[0].mxu0
          %v770 = vadd.f32 0.0, %v769
          %v771 = vpop.f32.mrb[0].mxu0
          %772 = vdwg.mxu0
          %v773 = vadd.f32 %v765, %v770
          %v774 = vrot.slane %v773, 4
          %v775 = vadd.f32 %v773, %v774
          %v776 = vrot.slane %v775, 2
          %v777 = vadd.f32 %v775, %v776
          %v778 = vrot.slane %v777, 1
          %v779 = vadd.f32 %v777, %v778
          %781 = vrot.lane.b32.xlu0 %v779, 96
          %v782 = vpop.permute.xlu0 %781
          %v784 = vadd.f32 %v779, %v782
          %785 = vrot.lane.b32.xlu0 %v779, 64
          %v786 = vpop.permute.xlu0 %785
          %v788 = vadd.f32 %v784, %v786
          %789 = vrot.lane.b32.xlu0 %v779, 32
          %v790 = vpop.permute.xlu0 %789
          %v792 = vadd.f32 %v788, %v790
          %794 = vrot.lane.b32.xlu0 %v792, 32
          %v795 = vpop.permute.xlu0 %794
          %797 = vrot.lane.b32.xlu0 %v792, 64
          %v798 = vpop.permute.xlu0 %797
          %800 = vrot.lane.b32.xlu0 %v792, 96
          %v801 = vpop.permute.xlu0 %800
          %v803 = vsel %vm613, %v792, %v795
          %v804 = vsel %vm615, %v803, %v798
          %v805 = vsel %vm617, %v804, %v801
          %v806 = vmul.f32 %v765, %v765
          %v807 = vmul.f32 %v770, %v770
          %v808 = vadd.f32 %v806, %v807
          %v809 = vrot.slane %v808, 4
          %v810 = vadd.f32 %v808, %v809
          %v811 = vrot.slane %v810, 2
          %v812 = vadd.f32 %v810, %v811
          %v813 = vrot.slane %v812, 1
          %v814 = vadd.f32 %v812, %v813
          %816 = vrot.lane.b32.xlu0 %v814, 96
          %v817 = vpop.permute.xlu0 %816
          %v819 = vadd.f32 %v814, %v817
          %820 = vrot.lane.b32.xlu0 %v814, 64
          %v821 = vpop.permute.xlu0 %820
          %v823 = vadd.f32 %v819, %v821
          %824 = vrot.lane.b32.xlu0 %v814, 32
          %v825 = vpop.permute.xlu0 %824
          %v827 = vadd.f32 %v823, %v825
          %829 = vrot.lane.b32.xlu0 %v827, 32
          %v830 = vpop.permute.xlu0 %829
          %832 = vrot.lane.b32.xlu0 %v827, 64
          %v833 = vpop.permute.xlu0 %832
          %835 = vrot.lane.b32.xlu0 %v827, 96
          %v836 = vpop.permute.xlu0 %835
          %v838 = vsel %vm613, %v827, %v830
          %v839 = vsel %vm615, %v838, %v833
          %v840 = vsel %vm617, %v839, %v836
          %v841 = vmul.f32 %v805, 0.015625
          %v842 = vmul.f32 %v840, 0.015625
          %v843 = vmul.f32 %v841, %v841
          %v844 = vsub.f32 %v842, %v843
          %v845 = vld [vmem:[%s4 + $0x1] sm:$0x1]
          %v846 = vadd.f32 %v844, 1e-05
          %v847 = vrsqrt.pop %v846
          %v848 = vmul.f32 %v845, %v847
          %v849 = vld [vmem:[%s5 + $0x1] sm:$0x1]
          %v850 = vmul.f32 %v841, %v848
          %v851 = vsub.f32 %v849, %v850
          %v852 = vlaneseq
          %v853 = vshrl.u32 %v852, 7
          %v854 = vsub.s32 0, %v853
          %v855 = vrot.slane %v848, %v854
          %v856 = vmul.f32 %v765, %v855
          %v857 = vmul.f32 %v770, %v855
          %v858 = vlaneseq
          %v859 = vshrl.u32 %v858, 7
          %v860 = vsub.s32 0, %v859
          %v861 = vrot.slane %v851, %v860
          %v862 = vadd.f32 %v856, %v861
          %v863 = vadd.f32 %v857, %v861
          %v864 = vmax.f32 %v862, 0.0
          %v865 = vmax.f32 %v863, 0.0
          %v866 = vadd.f32 %v864, %v679
          %v867 = vadd.f32 %v865, %v680
          %s868 = scalar_lea.vmem [#allocation8], 256
          %v869 = vld [vmem:[%s868] sm:$0xff]
          %v870 = vld [vmem:[%s868 + $0x8] sm:$0xff]
          %v871 = vld [vmem:[%s868 + $0x10] sm:$0xff]
          %v872 = vld [vmem:[%s868 + $0x18] sm:$0xff]
          %v873 = vld [vmem:[%s868 + $0x20] sm:$0xff]
          %v874 = vld [vmem:[%s868 + $0x28] sm:$0xff]
          %v875 = vld [vmem:[%s868 + $0x30] sm:$0xff]
          %v876 = vld [vmem:[%s868 + $0x38] sm:$0xff]
          %v877 = vld [vmem:[%s868 + $0x40] sm:$0xff]
          %v878 = vld [vmem:[%s868 + $0x48] sm:$0xff]
          %v879 = vld [vmem:[%s868 + $0x50] sm:$0xff]
          %v880 = vld [vmem:[%s868 + $0x58] sm:$0xff]
          %v881 = vld [vmem:[%s868 + $0x60] sm:$0xff]
          %v882 = vld [vmem:[%s868 + $0x68] sm:$0xff]
          %v883 = vld [vmem:[%s868 + $0x70] sm:$0xff]
          %v884 = vld [vmem:[%s868 + $0x78] sm:$0xff]
          %885 = vmatprep.subr.mxu0 0.0
          %886 = vmatpush1.msra.mxu0 %v869
          %887 = vmatprep.subr.mxu0 0.0
          %888 = vmatpush1.msra.mxu0 %v870
          %889 = vmatprep.subr.mxu0 0.0
          %890 = vmatpush1.msra.mxu0 %v871
          %891 = vmatprep.subr.mxu0 0.0
          %892 = vmatpush1.msra.mxu0 %v872
          %893 = vmatprep.subr.mxu0 0.0
          %894 = vmatpush1.msra.mxu0 %v873
          %895 = vmatprep.subr.mxu0 0.0
          %896 = vmatpush1.msra.mxu0 %v874
          %897 = vmatprep.subr.mxu0 0.0
          %898 = vmatpush1.msra.mxu0 %v875
          %899 = vmatprep.subr.mxu0 0.0
          %900 = vmatpush1.msra.mxu0 %v876
          %901 = vmatprep.subr.mxu0 0.0
          %902 = vmatpush1.msra.mxu0 %v877
          %903 = vmatprep.subr.mxu0 0.0
          %904 = vmatpush1.msra.mxu0 %v878
          %905 = vmatprep.subr.mxu0 0.0
          %906 = vmatpush1.msra.mxu0 %v879
          %907 = vmatprep.subr.mxu0 0.0
          %908 = vmatpush1.msra.mxu0 %v880
          %909 = vmatprep.subr.mxu0 0.0
          %910 = vmatpush1.msra.mxu0 %v881
          %911 = vmatprep.subr.mxu0 0.0
          %912 = vmatpush1.msra.mxu0 %v882
          %913 = vmatprep.subr.mxu0 0.0
          %914 = vmatpush1.msra.mxu0 %v883
          %915 = vmatprep.subr.mxu0 0.0
          %916 = vmatpush1.msra.mxu0 %v884
          %917 = vmatprep.subr.mxu0 0.0
          %918 = vmatpush1.msra.mxu0 0.0
          %919 = vmatprep.subr.mxu0 0.0
          %920 = vmatpush1.msra.mxu0 0.0
          %921 = vmatprep.subr.mxu0 0.0
          %922 = vmatpush1.msra.mxu0 0.0
          %923 = vmatprep.subr.mxu0 0.0
          %924 = vmatpush1.msra.mxu0 0.0
          %925 = vmatprep.subr.mxu0 0.0
          %926 = vmatpush1.msra.mxu0 0.0
          %927 = vmatprep.subr.mxu0 0.0
          %928 = vmatpush1.msra.mxu0 0.0
          %929 = vmatprep.subr.mxu0 0.0
          %930 = vmatpush1.msra.mxu0 0.0
          %931 = vmatprep.subr.mxu0 0.0
          %932 = vmatpush1.msra.mxu0 0.0
          %933 = vmatprep.subr.mxu0 0.0
          %934 = vmatpush1.msra.mxu0 0.0
          %935 = vmatprep.subr.mxu0 0.0
          %936 = vmatpush1.msra.mxu0 0.0
          %937 = vmatprep.subr.mxu0 0.0
          %938 = vmatpush1.msra.mxu0 0.0
          %939 = vmatprep.subr.mxu0 0.0
          %940 = vmatpush1.msra.mxu0 0.0
          %941 = vmatprep.subr.mxu0 0.0
          %942 = vmatpush1.msra.mxu0 0.0
          %943 = vmatprep.subr.mxu0 0.0
          %944 = vmatpush1.msra.mxu0 0.0
          %945 = vmatprep.subr.mxu0 0.0
          %946 = vmatpush1.msra.mxu0 0.0
          %947 = vmatprep.subr.mxu0 0.0
          %948 = vmatpush1.msra.mxu0 0.0
          %949 = vmatprep.mubr.f32.mxu0 0.0
          %950 = vmatmul.mubr.f32.gmra.mrb[0].mxu0 %v866
          %v951 = vpop.f32.mrb[0].mxu0
          %v952 = vadd.f32 0.0, %v951
          %v953 = vpop.f32.mrb[0].mxu0
          %954 = vmatprep.mubr.f32.mxu0 0.0
          %955 = vmatmul.mubr.f32.gmra.mrb[0].mxu0 %v867
          %v956 = vpop.f32.mrb[0].mxu0
          %v957 = vadd.f32 0.0, %v956
          %v958 = vpop.f32.mrb[0].mxu0
          %959 = vdwg.mxu0
          %v960 = vadd.f32 %v952, %v957
          %v961 = vrot.slane %v960, 4
          %v962 = vadd.f32 %v960, %v961
          %v963 = vrot.slane %v962, 2
          %v964 = vadd.f32 %v962, %v963
          %v965 = vrot.slane %v964, 1
          %v966 = vadd.f32 %v964, %v965
          %968 = vrot.lane.b32.xlu0 %v966, 96
          %v969 = vpop.permute.xlu0 %968
          %v971 = vadd.f32 %v966, %v969
          %972 = vrot.lane.b32.xlu0 %v966, 64
          %v973 = vpop.permute.xlu0 %972
          %v975 = vadd.f32 %v971, %v973
          %976 = vrot.lane.b32.xlu0 %v966, 32
          %v977 = vpop.permute.xlu0 %976
          %v979 = vadd.f32 %v975, %v977
          %981 = vrot.lane.b32.xlu0 %v979, 32
          %v982 = vpop.permute.xlu0 %981
          %984 = vrot.lane.b32.xlu0 %v979, 64
          %v985 = vpop.permute.xlu0 %984
          %987 = vrot.lane.b32.xlu0 %v979, 96
          %v988 = vpop.permute.xlu0 %987
          %v990 = vsel %vm613, %v979, %v982
          %v991 = vsel %vm615, %v990, %v985
          %v992 = vsel %vm617, %v991, %v988
          %v993 = vmul.f32 %v952, %v952
          %v994 = vmul.f32 %v957, %v957
          %v995 = vadd.f32 %v993, %v994
          %v996 = vrot.slane %v995, 4
          %v997 = vadd.f32 %v995, %v996
          %v998 = vrot.slane %v997, 2
          %v999 = vadd.f32 %v997, %v998
          %v1000 = vrot.slane %v999, 1
          %v1001 = vadd.f32 %v999, %v1000
          %1003 = vrot.lane.b32.xlu0 %v1001, 96
          %v1004 = vpop.permute.xlu0 %1003
          %v1006 = vadd.f32 %v1001, %v1004
          %1007 = vrot.lane.b32.xlu0 %v1001, 64
          %v1008 = vpop.permute.xlu0 %1007
          %v1010 = vadd.f32 %v1006, %v1008
          %1011 = vrot.lane.b32.xlu0 %v1001, 32
          %v1012 = vpop.permute.xlu0 %1011
          %v1014 = vadd.f32 %v1010, %v1012
          %1016 = vrot.lane.b32.xlu0 %v1014, 32
          %v1017 = vpop.permute.xlu0 %1016
          %1019 = vrot.lane.b32.xlu0 %v1014, 64
          %v1020 = vpop.permute.xlu0 %1019
          %1022 = vrot.lane.b32.xlu0 %v1014, 96
          %v1023 = vpop.permute.xlu0 %1022
          %v1025 = vsel %vm613, %v1014, %v1017
          %v1026 = vsel %vm615, %v1025, %v1020
          %v1027 = vsel %vm617, %v1026, %v1023
          %v1028 = vmul.f32 %v992, 0.015625
          %v1029 = vmul.f32 %v1027, 0.015625
          %v1030 = vmul.f32 %v1028, %v1028
          %v1031 = vsub.f32 %v1029, %v1030
          %v1032 = vld [vmem:[%s4 + $0x2] sm:$0x1]
          %v1033 = vadd.f32 %v1031, 1e-05
          %v1034 = vrsqrt.pop %v1033
          %v1035 = vmul.f32 %v1032, %v1034
          %v1036 = vld [vmem:[%s5 + $0x2] sm:$0x1]
          %v1037 = vmul.f32 %v1028, %v1035
          %v1038 = vsub.f32 %v1036, %v1037
          %v1039 = vlaneseq
          %v1040 = vshrl.u32 %v1039, 7
          %v1041 = vsub.s32 0, %v1040
          %v1042 = vrot.slane %v1035, %v1041
          %v1043 = vmul.f32 %v952, %v1042
          %v1044 = vmul.f32 %v957, %v1042
          %v1045 = vlaneseq
          %v1046 = vshrl.u32 %v1045, 7
          %v1047 = vsub.s32 0, %v1046
          %v1048 = vrot.slane %v1038, %v1047
          %v1049 = vadd.f32 %v1043, %v1048
          %v1050 = vadd.f32 %v1044, %v1048
          %v1051 = vmax.f32 %v1049, 0.0
          %v1052 = vmax.f32 %v1050, 0.0
          %v1053 = vadd.f32 %v1051, %v866
          %v1054 = vadd.f32 %v1052, %v867
          %1055 = vst [vmem:[#allocation2] sm:$0xff] %v1053
          %1056 = vst [vmem:[#allocation2 + $0x8] sm:$0xff] %v1054
        $region76: #{tpu_custom_call.1} parent=51 // pred_fallthru
          _
        // Predicated region
        $region77: #{tpu_custom_call.1} parent=51 // pred_check
          %p1057 = pneg %p484
        $region78: #{tpu_custom_call.1} parent=51 // pred_check_branch
          %1059 = sbr.rel (%p1057) target = $region80
        $region79: #{tpu_custom_call.1} parent=51 // pred_region
          %s1060 = scalar_lea.vmem [#allocation2], %s388
          %v1061 = vld [vmem:[%s1060] sm:$0xff]
          %v1062 = vld [vmem:[#allocation9] sm:$0xff]
          %v1063 = vld [vmem:[#allocation9 + $0x8] sm:$0xff]
          %v1064 = vld [vmem:[#allocation9 + $0x10] sm:$0xff]
          %v1065 = vld [vmem:[#allocation9 + $0x18] sm:$0xff]
          %v1066 = vld [vmem:[#allocation9 + $0x20] sm:$0xff]
          %v1067 = vld [vmem:[#allocation9 + $0x28] sm:$0xff]
          %v1068 = vld [vmem:[#allocation9 + $0x30] sm:$0xff]
          %v1069 = vld [vmem:[#allocation9 + $0x38] sm:$0xff]
          %v1070 = vld [vmem:[#allocation9 + $0x40] sm:$0xff]
          %v1071 = vld [vmem:[#allocation9 + $0x48] sm:$0xff]
          %v1072 = vld [vmem:[#allocation9 + $0x50] sm:$0xff]
          %v1073 = vld [vmem:[#allocation9 + $0x58] sm:$0xff]
          %v1074 = vld [vmem:[#allocation9 + $0x60] sm:$0xff]
          %v1075 = vld [vmem:[#allocation9 + $0x68] sm:$0xff]
          %v1076 = vld [vmem:[#allocation9 + $0x70] sm:$0xff]
          %v1077 = vld [vmem:[#allocation9 + $0x78] sm:$0xff]
          %v1078 = vld [vmem:[%s7] sm:$0x1]
          %v1080 = vlaneseq
          %v1081 = vshrl.u32 %v1080, 7
          %v1082 = vsub.s32 0, %v1081
          %v1083 = vrot.slane %v1078, %v1082
          %1085 = vmatprep.subr.mxu0 0.0
          %1086 = vmatpush1.msra.mxu0 %v1062
          %1087 = vmatprep.subr.mxu0 0.0
          %1088 = vmatpush1.msra.mxu0 %v1063
          %1089 = vmatprep.subr.mxu0 0.0
          %1090 = vmatpush1.msra.mxu0 %v1064
          %1091 = vmatprep.subr.mxu0 0.0
          %1092 = vmatpush1.msra.mxu0 %v1065
          %1093 = vmatprep.subr.mxu0 0.0
          %1094 = vmatpush1.msra.mxu0 %v1066
          %1095 = vmatprep.subr.mxu0 0.0
          %1096 = vmatpush1.msra.mxu0 %v1067
          %1097 = vmatprep.subr.mxu0 0.0
          %1098 = vmatpush1.msra.mxu0 %v1068
          %1099 = vmatprep.subr.mxu0 0.0
          %1100 = vmatpush1.msra.mxu0 %v1069
          %1101 = vmatprep.subr.mxu0 0.0
          %1102 = vmatpush1.msra.mxu0 %v1070
          %1103 = vmatprep.subr.mxu0 0.0
          %1104 = vmatpush1.msra.mxu0 %v1071
          %1105 = vmatprep.subr.mxu0 0.0
          %1106 = vmatpush1.msra.mxu0 %v1072
          %1107 = vmatprep.subr.mxu0 0.0
          %1108 = vmatpush1.msra.mxu0 %v1073
          %1109 = vmatprep.subr.mxu0 0.0
          %1110 = vmatpush1.msra.mxu0 %v1074
          %1111 = vmatprep.subr.mxu0 0.0
          %1112 = vmatpush1.msra.mxu0 %v1075
          %1113 = vmatprep.subr.mxu0 0.0
          %1114 = vmatpush1.msra.mxu0 %v1076
          %1115 = vmatprep.subr.mxu0 0.0
          %1116 = vmatpush1.msra.mxu0 %v1077
          %1117 = vmatprep.subr.mxu0 0.0
          %1118 = vmatpush1.msra.mxu0 0.0
          %1119 = vmatprep.subr.mxu0 0.0
          %1120 = vmatpush1.msra.mxu0 0.0
          %1121 = vmatprep.subr.mxu0 0.0
          %1122 = vmatpush1.msra.mxu0 0.0
          %1123 = vmatprep.subr.mxu0 0.0
          %1124 = vmatpush1.msra.mxu0 0.0
          %1125 = vmatprep.subr.mxu0 0.0
          %1126 = vmatpush1.msra.mxu0 0.0
          %1127 = vmatprep.subr.mxu0 0.0
          %1128 = vmatpush1.msra.mxu0 0.0
          %1129 = vmatprep.subr.mxu0 0.0
          %1130 = vmatpush1.msra.mxu0 0.0
          %1131 = vmatprep.subr.mxu0 0.0
          %1132 = vmatpush1.msra.mxu0 0.0
          %1133 = vmatprep.subr.mxu0 0.0
          %1134 = vmatpush1.msra.mxu0 0.0
          %1135 = vmatprep.subr.mxu0 0.0
          %1136 = vmatpush1.msra.mxu0 0.0
          %1137 = vmatprep.subr.mxu0 0.0
          %1138 = vmatpush1.msra.mxu0 0.0
          %1139 = vmatprep.subr.mxu0 0.0
          %1140 = vmatpush1.msra.mxu0 0.0
          %1141 = vmatprep.subr.mxu0 0.0
          %1142 = vmatpush1.msra.mxu0 0.0
          %1143 = vmatprep.subr.mxu0 0.0
          %1144 = vmatpush1.msra.mxu0 0.0
          %1145 = vmatprep.subr.mxu0 0.0
          %1146 = vmatpush1.msra.mxu0 0.0
          %1147 = vmatprep.subr.mxu0 0.0
          %1148 = vmatpush1.msra.mxu0 0.0
          %1149 = vmatprep.mubr.f32.mxu0 0.0
          %1150 = vmatmul.mubr.f32.gmra.mrb[0].mxu0 %v1061
          %v1151 = vpop.f32.mrb[0].mxu0
          %v1152 = vadd.f32 %v1083, %v1151
          %v1153 = vpop.f32.mrb[0].mxu0
          %1154 = vdwg.mxu0
          %1155 = vst [vmem:[%s384] sm:$0xff] %v1152
        $region80: #{tpu_custom_call.1} parent=51 // pred_fallthru
          _
        %s1156 = sand.u32 %s226, 1
        %s1157 = scalar_lea.sflag [#allocation5], %s1156
        %s1158 = sand.u32 %s226, 1
        %s1159 = smul.addr %s1158, 8
        %s1160 = scalar_lea.vmem [#allocation11], %s1159
        // Predicated region
        $region81: #{tpu_custom_call.1} parent=51 // pred_check
          %p1161 = pneg %p236
        $region82: #{tpu_custom_call.1} parent=51 // pred_check_branch
          %1163 = sbr.rel (%p1161) target = $region84
        $region83: #{tpu_custom_call.1} parent=51 // pred_region
          %s1164 = smul.u32 %s31, %s32
          %s1166 = ssub.s32 128, 128
          %1167 = vsyncadd %s1157, %s1166
          %s1168 = smul.addr %s1164, 128
          %s1169 = scalar_lea.hbm %s8, %s1168
          %s1171 = sshll.u32 %s1160, 4
          %s1172 = int_to_ptr.vmem [resolvable:$true] %s1171
          %1174 = dma.vmem_to_hbm [thread:$0]  %s1172, 128, %s1169, %s1157
        $region84: #{tpu_custom_call.1} parent=51 // pred_fallthru
          _
      $region52: #{tpu_custom_call.1} parent=5 // pred_fallthru
        _
      %p1175 = scmp.le.s32.totalorder 2, %s22
      // Predicated region
      $region85: #{tpu_custom_call.1} parent=5 // pred_check
        %p1176 = pneg %p1175
      $region86: #{tpu_custom_call.1} parent=5 // pred_check_branch
        %1178 = sbr.rel (%p1176) target = $region88
      $region87: #{tpu_custom_call.1} parent=5 // pred_region
        %s1179 = ssub.s32 %s22, 2
        // Predicated region
        $region89: #{tpu_custom_call.1} parent=87 // pred_check
          %p1180 = pneg %p242
        $region90: #{tpu_custom_call.1} parent=87 // pred_check_branch
          %1182 = sbr.rel (%p1180) target = $region92
        $region91: #{tpu_custom_call.1} parent=87 // pred_region
          %s1183 = sand.u32 %s227, 1
          %s1184 = scalar_lea.sflag [#allocation5], %s1183
          %s1185 = sand.u32 %s227, 1
          %s1186 = smul.addr %s1185, 8
          %s1187 = scalar_lea.vmem [#allocation11], %s1186
          %1188 = dma.done %s1184, 128
        $region92: #{tpu_custom_call.1} parent=87 // pred_fallthru
          _
      $region88: #{tpu_custom_call.1} parent=5 // pred_fallthru
        _
    $region6: #{tpu_custom_call.1} parent=1 // loop_footer
      %s26 = sadd.s32 1, %s22
    $region7: #{tpu_custom_call.1} parent=1 // loop_footer_branch
      %21 = sbr.rel target = $region3
    $region8: #{tpu_custom_call.1} parent=1 // loop_exit
      _
    %1189 = vsyncpa [#allocation4], 1
    %s1190 = scalar_lea.sflag [#allocation4], 1
    %1191 = vsyncpa %s1190, 1
    %1192 = vsyncpa [#allocation7], 1
    %1193 = vsyncpa [#allocation10], 1
    %1194 = vsyncpa [#allocation5], 1
    %s1195 = scalar_lea.sflag [#allocation5], 1
    %1196 = vsyncpa %s1195, 1

</llo_original>
